<compile_context>
chip_gen: v5e
topology: v5e:2x2
jax: 0.10.0
libtpu: 0.0.40
codegen_flags: <defaults>
</compile_context>

<pallas_src>
import numpy as np
import jax
import jax.numpy as jnp
from jax.experimental import pallas as pl
from jax.experimental.pallas import tpu as pltpu

# ---------------------------------------------------------------------------
# Model hyper-parameters (small, deterministic, synthetic)
# ---------------------------------------------------------------------------
EMBED_SIZE = 32
HIDDEN_SIZE = 32
VOCAB_SIZE = 48
NUM_LAYERS = 2          # kernel below is written for exactly 2 layers
BATCH = 4
CAP_T = 8               # caption length (before prepending features)
SEQ_T = CAP_T + 1       # LSTM sees features + caption embeddings
LENGTHS = [9, 7, 5, 3]  # must be sorted descending (enforce_sorted=True)
LANE = 128              # TPU lane width; vocab projection padded to this
SUBLANE = 8             # TPU sublane width; batch padded to this


def _round_up(n, m):
    return ((n + m - 1) // m) * m


# ---------------------------------------------------------------------------
# Fused Pallas kernel: 2-layer LSTM recurrence + vocab projection
# ---------------------------------------------------------------------------
def make_decoder_kernel(BP, T, E, H):
    G = 4 * H

    def kernel(x_ref, wih0_ref, whh0_ref, b0_ref, wih1_ref, whh1_ref, b1_ref,
               wlin_ref, blin_ref, out_ref, xg_scr, hid_scr):
        # ---- hoist weights / constants out of the recurrence --------------
        wih0 = wih0_ref[...]
        whh0 = whh0_ref[...]
        wih1 = wih1_ref[...]
        whh1 = whh1_ref[...]
        b1 = b1_ref[...]
        wlin = wlin_ref[...]
        blin = blin_ref[...]

        lane = jax.lax.broadcasted_iota(jnp.int32, (BP, G), 1)
        g_mask = (lane >= 2 * H) & (lane < 3 * H)     # lanes of the "g" gate

        def lstm_gates(gates, c):
            # PyTorch gate order i|f|g|o.  One EUP tanh pass over the whole
            # slab: sigmoid(x) = 0.5*(tanh(x/2)+1) on the i/f/o lanes, plain
            # tanh on the g lanes, selected with a lane mask (VPU).
            pre = jnp.where(g_mask, gates, 0.5 * gates)
            th = jnp.tanh(pre)
            act = jnp.where(g_mask, th, 0.5 * (th + 1.0))
            i = act[:, 0 * H:1 * H]
            f = act[:, 1 * H:2 * H]
            g = act[:, 2 * H:3 * H]
            o = act[:, 3 * H:4 * H]
            c_new = f * c + i * g
            h_new = o * jnp.tanh(c_new)
            return h_new, c_new

        # ---- prologue: layer-0 input projection for ALL timesteps ---------
        # (T*BP, E) @ (E, 4H) + b0 : one well-shaped MXU call, off the serial
        # path of the recurrence.
        xg_scr[...] = (jnp.dot(x_ref[...], wih0,
                               preferred_element_type=jnp.float32)
                       + b0_ref[...])

        # ---- recurrence (fully unrolled; T is small & static) -------------
        h0 = jnp.zeros((BP, H), jnp.float32)
        c0 = jnp.zeros((BP, H), jnp.float32)
        h1 = jnp.zeros((BP, H), jnp.float32)
        c1 = jnp.zeros((BP, H), jnp.float32)
        for t in range(T):
            # sublane-aligned (BP, 4H) slice of the hoisted input projection
            g0 = xg_scr[t * BP:(t + 1) * BP, :] + jnp.dot(
                h0, whh0, preferred_element_type=jnp.float32)
            h0, c0 = lstm_gates(g0, c0)
            # layer 1: the h1 @ W_hh1 term depends only on the previous step,
            # so the scheduler can issue it before h0 of this step is ready.
            g1 = (jnp.dot(h0, wih1, preferred_element_type=jnp.float32)
                  + jnp.dot(h1, whh1, preferred_element_type=jnp.float32)
                  + b1)
            h1, c1 = lstm_gates(g1, c1)
            hid_scr[t * BP:(t + 1) * BP, :] = h1    # aligned full-tile store

        # ---- epilogue: fused, lane-dense vocab projection ------------------
        out_ref[...] = (jnp.dot(hid_scr[...], wlin,
                                preferred_element_type=jnp.float32) + blin)

    return kernel


def run_decoder(x_tm2d, wih0, whh0, b0, wih1, whh1, b1, wlin_pad, blin_pad,
                *, BP, T, E, H):
    """x_tm2d: (T*BP, E) time-major rows.  Returns (T*BP, Vpad) logits."""
    Vpad = wlin_pad.shape[1]
    kernel = make_decoder_kernel(BP, T, E, H)
    return pl.pallas_call(
        kernel,
        out_shape=jax.ShapeDtypeStruct((T * BP, Vpad), jnp.float32),
        scratch_shapes=[
            pltpu.VMEM((T * BP, 4 * H), jnp.float32),   # hoisted x @ W_ih0 + b0
            pltpu.VMEM((T * BP, H), jnp.float32),       # last-layer hiddens
        ],
    )(x_tm2d, wih0, whh0, b0, wih1, whh1, b1, wlin_pad, blin_pad)


# ---------------------------------------------------------------------------
# Packed-sequence row orderings (lengths are static Python ints)
# ---------------------------------------------------------------------------
def packed_row_indices_time_major(lengths, row_stride):
    """Row indices into (T*row_stride, .) laid out time-major (t outer, b inner)."""
    idx = []
    for t in range(max(lengths)):
        for b, L in enumerate(lengths):
            if L > t:
                idx.append(t * row_stride + b)
    return np.asarray(idx, dtype=np.int32)


def packed_row_indices_batch_major(lengths, total_T):
    """Row indices into the flattened (B*T, .) hiddens (reference layout)."""
    idx = []
    for t in range(max(lengths)):
        for b, L in enumerate(lengths):
            if L > t:
                idx.append(b * total_T + t)
    return np.asarray(idx, dtype=np.int32)


# ---------------------------------------------------------------------------
# Forward pass (glue in JAX, hot path in the Pallas kernel)
# ---------------------------------------------------------------------------
def decoder_lstm_forward(features, captions, lengths, params):
    """Reproduces DecoderLSTM.forward.  Returns (sum(lengths), vocab)."""
    (embed_tbl, wih0, whh0, b0, wih1, whh1, b1, w_lin_t, b_lin) = params
    # glue: embedding gather + concat features as step 0
    emb = jnp.take(embed_tbl, captions, axis=0)                  # (B, Tc, E)
    x = jnp.concatenate([features[:, None, :], emb], axis=1)     # (B, T, E)
    B, T, E = x.shape
    H = whh0.shape[0]
    V = w_lin_t.shape[1]
    Vpad = _round_up(V, LANE)
    BP = _round_up(B, SUBLANE)

    # glue: time-major flatten with batch zero-padded to the sublane width
    x_tm = jnp.transpose(x, (1, 0, 2))                           # (T, B, E)
    x_pad = jnp.zeros((T, BP, E), jnp.float32).at[:, :B, :].set(x_tm)
    x_tm2d = x_pad.reshape(T * BP, E)                            # (T*BP, E)

    # glue: lane-dense (zero-padded) vocab projection weights
    wlin_pad = jnp.zeros((H, Vpad), jnp.float32).at[:, :V].set(w_lin_t)
    blin_pad = jnp.zeros((1, Vpad), jnp.float32).at[:, :V].set(b_lin)

    # hot path: fused LSTM recurrence + vocab projection (single Pallas call)
    logits_pad = run_decoder(x_tm2d, wih0, whh0, b0, wih1, whh1, b1,
                             wlin_pad, blin_pad, BP=BP, T=T, E=E, H=H)

    # glue: gather rows in PyTorch packed order, drop batch/vocab padding
    idx = packed_row_indices_time_major(lengths, BP)
    return logits_pad[idx][:, :V]                                # (N, V)


# ---------------------------------------------------------------------------
# Pure-JAX reference (for correctness check)
# ---------------------------------------------------------------------------
def _ref_lstm_cell(x, h, c, w_ih, w_hh, b):
    H = h.shape[-1]
    gates = x @ w_ih + h @ w_hh + b
    i = jax.nn.sigmoid(gates[:, 0:H])
    f = jax.nn.sigmoid(gates[:, H:2 * H])
    g = jnp.tanh(gates[:, 2 * H:3 * H])
    o = jax.nn.sigmoid(gates[:, 3 * H:4 * H])
    c_new = f * c + i * g
    h_new = o * jnp.tanh(c_new)
    return h_new, c_new


def reference_forward(features, captions, lengths, params):
    (embed_tbl, wih0, whh0, b0, wih1, whh1, b1, w_lin_t, b_lin) = params
    emb = jnp.take(embed_tbl, captions, axis=0)
    x = jnp.concatenate([features[:, None, :], emb], axis=1)
    B, T, _ = x.shape
    H = whh0.shape[0]
    h = jnp.zeros((NUM_LAYERS, B, H), jnp.float32)
    c = jnp.zeros((NUM_LAYERS, B, H), jnp.float32)
    outs = []
    for t in range(T):
        h0, c0 = _ref_lstm_cell(x[:, t, :], h[0], c[0], wih0, whh0, b0)
        h1, c1 = _ref_lstm_cell(h0, h[1], c[1], wih1, whh1, b1)
        h = jnp.stack([h0, h1])
        c = jnp.stack([c0, c1])
        outs.append(h1)
    hiddens = jnp.stack(outs, axis=1)                            # (B, T, H)
    idx = packed_row_indices_batch_major(lengths, T)
    h_packed = hiddens.reshape(-1, H)[idx]
    return h_packed @ w_lin_t + b_lin


# ---------------------------------------------------------------------------
# Main
# ---------------------------------------------------------------------------
if __name__ == "__main__":
    key = jax.random.PRNGKey(0)
    ks = jax.random.split(key, 12)
    scale = 0.1

    embed_tbl = scale * jax.random.normal(ks[0], (VOCAB_SIZE, EMBED_SIZE), jnp.float32)
    # LSTM layer 0 (input = embed), layer 1 (input = hidden); pre-transposed
    # to (in_features, 4H).  Gate order i|f|g|o; b = b_ih + b_hh folded.
    wih0 = scale * jax.random.normal(ks[1], (EMBED_SIZE, 4 * HIDDEN_SIZE), jnp.float32)
    whh0 = scale * jax.random.normal(ks[2], (HIDDEN_SIZE, 4 * HIDDEN_SIZE), jnp.float32)
    b0 = scale * jax.random.normal(ks[3], (1, 4 * HIDDEN_SIZE), jnp.float32)
    wih1 = scale * jax.random.normal(ks[4], (HIDDEN_SIZE, 4 * HIDDEN_SIZE), jnp.float32)
    whh1 = scale * jax.random.normal(ks[5], (HIDDEN_SIZE, 4 * HIDDEN_SIZE), jnp.float32)
    b1 = scale * jax.random.normal(ks[6], (1, 4 * HIDDEN_SIZE), jnp.float32)
    w_lin_t = scale * jax.random.normal(ks[7], (HIDDEN_SIZE, VOCAB_SIZE), jnp.float32)
    b_lin = scale * jax.random.normal(ks[8], (1, VOCAB_SIZE), jnp.float32)
    params = (embed_tbl, wih0, whh0, b0, wih1, whh1, b1, w_lin_t, b_lin)

    features = jax.random.normal(ks[9], (BATCH, EMBED_SIZE), jnp.float32)
    captions = jax.random.randint(ks[10], (BATCH, CAP_T), 0, VOCAB_SIZE, jnp.int32)

    out = decoder_lstm_forward(features, captions, LENGTHS, params)
    out = jax.block_until_ready(out)

    ref = jax.block_until_ready(reference_forward(features, captions, LENGTHS, params))
    assert out.shape == (sum(LENGTHS), VOCAB_SIZE), out.shape
    np.testing.assert_allclose(np.asarray(out), np.asarray(ref), rtol=1e-4, atol=1e-4)

    # TODO(synk): greedy `sample()` loop (argmax feedback) not implemented; only forward() is.
    print("KERNEL_OK")
</pallas_src>

<mosaic_0001>
module attributes {stable_mosaic.version = 11 : i64} {
  func.func @kernel(%arg0: memref<72x32xf32, #tpu.memory_space<vmem>>, %arg1: memref<32x128xf32, #tpu.memory_space<vmem>>, %arg2: memref<32x128xf32, #tpu.memory_space<vmem>>, %arg3: memref<1x128xf32, #tpu.memory_space<vmem>>, %arg4: memref<32x128xf32, #tpu.memory_space<vmem>>, %arg5: memref<32x128xf32, #tpu.memory_space<vmem>>, %arg6: memref<1x128xf32, #tpu.memory_space<vmem>>, %arg7: memref<32x128xf32, #tpu.memory_space<vmem>>, %arg8: memref<1x128xf32, #tpu.memory_space<vmem>>, %arg9: memref<72x128xf32, #tpu.memory_space<vmem>>, %arg10: memref<72x128xf32, #tpu.memory_space<vmem>>, %arg11: memref<72x32xf32, #tpu.memory_space<vmem>>) attributes {dimension_semantics = [], scalar_prefetch = 0 : i64, scratch_operands = 2 : i64, tpu.core_type = #tpu.core_type<tc>} {
    %c0 = arith.constant 0 : index
    %c0_0 = arith.constant 0 : index
    %0 = vector.load %arg1[%c0, %c0_0] : memref<32x128xf32, #tpu.memory_space<vmem>>, vector<32x128xf32>
    %c0_1 = arith.constant 0 : index
    %c0_2 = arith.constant 0 : index
    %1 = vector.load %arg2[%c0_1, %c0_2] : memref<32x128xf32, #tpu.memory_space<vmem>>, vector<32x128xf32>
    %c0_3 = arith.constant 0 : index
    %c0_4 = arith.constant 0 : index
    %2 = vector.load %arg4[%c0_3, %c0_4] : memref<32x128xf32, #tpu.memory_space<vmem>>, vector<32x128xf32>
    %c0_5 = arith.constant 0 : index
    %c0_6 = arith.constant 0 : index
    %3 = vector.load %arg5[%c0_5, %c0_6] : memref<32x128xf32, #tpu.memory_space<vmem>>, vector<32x128xf32>
    %c0_7 = arith.constant 0 : index
    %c0_8 = arith.constant 0 : index
    %4 = vector.load %arg6[%c0_7, %c0_8] : memref<1x128xf32, #tpu.memory_space<vmem>>, vector<1x128xf32>
    %c0_9 = arith.constant 0 : index
    %c0_10 = arith.constant 0 : index
    %5 = vector.load %arg7[%c0_9, %c0_10] : memref<32x128xf32, #tpu.memory_space<vmem>>, vector<32x128xf32>
    %c0_11 = arith.constant 0 : index
    %c0_12 = arith.constant 0 : index
    %6 = vector.load %arg8[%c0_11, %c0_12] : memref<1x128xf32, #tpu.memory_space<vmem>>, vector<1x128xf32>
    %7 = tpu.iota {dimensions = array<i32: 1>} : vector<8x128xi32>
    %c64_i32 = arith.constant 64 : i32
    %8 = vector.broadcast %c64_i32 : i32 to vector<8x128xi32>
    %9 = arith.cmpi sge, %7, %8 : vector<8x128xi32>
    %c96_i32 = arith.constant 96 : i32
    %10 = vector.broadcast %c96_i32 : i32 to vector<8x128xi32>
    %11 = arith.cmpi slt, %7, %10 : vector<8x128xi32>
    %12 = arith.andi %9, %11 : vector<8x128xi1>
    %c0_13 = arith.constant 0 : index
    %c0_14 = arith.constant 0 : index
    %13 = vector.load %arg0[%c0_13, %c0_14] : memref<72x32xf32, #tpu.memory_space<vmem>>, vector<72x32xf32>
    %cst = arith.constant dense<0.000000e+00> : vector<72x128xf32>
    %14 = tpu.matmul %13, %0, %cst {dimension_numbers = #tpu.dot_dimension_numbers<[1], [0], [0], [1], [0, 0, 1, 1], [], []>} : vector<72x32xf32>, vector<32x128xf32>, vector<72x128xf32> -> vector<72x128xf32>
    %c0_15 = arith.constant 0 : index
    %c0_16 = arith.constant 0 : index
    %15 = vector.load %arg3[%c0_15, %c0_16] : memref<1x128xf32, #tpu.memory_space<vmem>>, vector<1x128xf32>
    %16 = vector.broadcast %15 : vector<1x128xf32> to vector<72x128xf32>
    %17 = arith.addf %14, %16 : vector<72x128xf32>
    %c0_17 = arith.constant 0 : index
    %c0_18 = arith.constant 0 : index
    %18 = vector.load %arg10[%c0_17, %c0_18] : memref<72x128xf32, #tpu.memory_space<vmem>>, vector<72x128xf32>
    tpu.vector_store %arg10[%c0_17, %c0_18], %17 {strides = array<i32>} : memref<72x128xf32, #tpu.memory_space<vmem>>, vector<72x128xf32>,
    %cst_19 = arith.constant 0.000000e+00 : f32
    %19 = vector.broadcast %cst_19 : f32 to vector<8x32xf32>
    %cst_20 = arith.constant 0.000000e+00 : f32
    %20 = vector.broadcast %cst_20 : f32 to vector<8x32xf32>
    %cst_21 = arith.constant 0.000000e+00 : f32
    %21 = vector.broadcast %cst_21 : f32 to vector<8x32xf32>
    %cst_22 = arith.constant 0.000000e+00 : f32
    %22 = vector.broadcast %cst_22 : f32 to vector<8x32xf32>
    %c0_23 = arith.constant 0 : index
    %c0_24 = arith.constant 0 : index
    %23 = vector.load %arg10[%c0_23, %c0_24] : memref<72x128xf32, #tpu.memory_space<vmem>>, vector<8x128xf32>
    %cst_25 = arith.constant dense<0.000000e+00> : vector<8x128xf32>
    %24 = tpu.matmul %19, %1, %cst_25 {dimension_numbers = #tpu.dot_dimension_numbers<[1], [0], [0], [1], [0, 0, 1, 1], [], []>} : vector<8x32xf32>, vector<32x128xf32>, vector<8x128xf32> -> vector<8x128xf32>
    %25 = arith.addf %23, %24 : vector<8x128xf32>
    %cst_26 = arith.constant 5.000000e-01 : f32
    %26 = vector.broadcast %cst_26 : f32 to vector<8x128xf32>
    %27 = arith.mulf %26, %25 : vector<8x128xf32>
    %28 = arith.select %12, %25, %27 : vector<8x128xi1>, vector<8x128xf32>
    %29 = math.tanh %28 : vector<8x128xf32>
    %cst_27 = arith.constant 1.000000e+00 : f32
    %30 = vector.broadcast %cst_27 : f32 to vector<8x128xf32>
    %31 = arith.addf %29, %30 : vector<8x128xf32>
    %cst_28 = arith.constant 5.000000e-01 : f32
    %32 = vector.broadcast %cst_28 : f32 to vector<8x128xf32>
    %33 = arith.mulf %32, %31 : vector<8x128xf32>
    %34 = arith.select %12, %29, %33 : vector<8x128xi1>, vector<8x128xf32>
    %35 = vector.extract_strided_slice %34 {offsets = [0, 0], sizes = [8, 32], strides = [1, 1]} : vector<8x128xf32> to vector<8x32xf32>
    %36 = vector.extract_strided_slice %34 {offsets = [0, 32], sizes = [8, 32], strides = [1, 1]} : vector<8x128xf32> to vector<8x32xf32>
    %37 = vector.extract_strided_slice %34 {offsets = [0, 64], sizes = [8, 32], strides = [1, 1]} : vector<8x128xf32> to vector<8x32xf32>
    %38 = vector.extract_strided_slice %34 {offsets = [0, 96], sizes = [8, 32], strides = [1, 1]} : vector<8x128xf32> to vector<8x32xf32>
    %39 = arith.mulf %36, %20 : vector<8x32xf32>
    %40 = arith.mulf %35, %37 : vector<8x32xf32>
    %41 = arith.addf %39, %40 : vector<8x32xf32>
    %42 = math.tanh %41 : vector<8x32xf32>
    %43 = arith.mulf %38, %42 : vector<8x32xf32>
    %cst_29 = arith.constant dense<0.000000e+00> : vector<8x128xf32>
    %44 = tpu.matmul %43, %2, %cst_29 {dimension_numbers = #tpu.dot_dimension_numbers<[1], [0], [0], [1], [0, 0, 1, 1], [], []>} : vector<8x32xf32>, vector<32x128xf32>, vector<8x128xf32> -> vector<8x128xf32>
    %cst_30 = arith.constant dense<0.000000e+00> : vector<8x128xf32>
    %45 = tpu.matmul %21, %3, %cst_30 {dimension_numbers = #tpu.dot_dimension_numbers<[1], [0], [0], [1], [0, 0, 1, 1], [], []>} : vector<8x32xf32>, vector<32x128xf32>, vector<8x128xf32> -> vector<8x128xf32>
    %46 = arith.addf %44, %45 : vector<8x128xf32>
    %47 = vector.broadcast %4 : vector<1x128xf32> to vector<8x128xf32>
    %48 = arith.addf %46, %47 : vector<8x128xf32>
    %cst_31 = arith.constant 5.000000e-01 : f32
    %49 = vector.broadcast %cst_31 : f32 to vector<8x128xf32>
    %50 = arith.mulf %49, %48 : vector<8x128xf32>
    %51 = arith.select %12, %48, %50 : vector<8x128xi1>, vector<8x128xf32>
    %52 = math.tanh %51 : vector<8x128xf32>
    %cst_32 = arith.constant 1.000000e+00 : f32
    %53 = vector.broadcast %cst_32 : f32 to vector<8x128xf32>
    %54 = arith.addf %52, %53 : vector<8x128xf32>
    %cst_33 = arith.constant 5.000000e-01 : f32
    %55 = vector.broadcast %cst_33 : f32 to vector<8x128xf32>
    %56 = arith.mulf %55, %54 : vector<8x128xf32>
    %57 = arith.select %12, %52, %56 : vector<8x128xi1>, vector<8x128xf32>
    %58 = vector.extract_strided_slice %57 {offsets = [0, 0], sizes = [8, 32], strides = [1, 1]} : vector<8x128xf32> to vector<8x32xf32>
    %59 = vector.extract_strided_slice %57 {offsets = [0, 32], sizes = [8, 32], strides = [1, 1]} : vector<8x128xf32> to vector<8x32xf32>
    %60 = vector.extract_strided_slice %57 {offsets = [0, 64], sizes = [8, 32], strides = [1, 1]} : vector<8x128xf32> to vector<8x32xf32>
    %61 = vector.extract_strided_slice %57 {offsets = [0, 96], sizes = [8, 32], strides = [1, 1]} : vector<8x128xf32> to vector<8x32xf32>
    %62 = arith.mulf %59, %22 : vector<8x32xf32>
    %63 = arith.mulf %58, %60 : vector<8x32xf32>
    %64 = arith.addf %62, %63 : vector<8x32xf32>
    %65 = math.tanh %64 : vector<8x32xf32>
    %66 = arith.mulf %61, %65 : vector<8x32xf32>
    %c0_34 = arith.constant 0 : index
    %c0_35 = arith.constant 0 : index
    %67 = vector.load %arg11[%c0_34, %c0_35] : memref<72x32xf32, #tpu.memory_space<vmem>>, vector<8x32xf32>
    tpu.vector_store %arg11[%c0_34, %c0_35], %66 {strides = array<i32>} : memref<72x32xf32, #tpu.memory_space<vmem>>, vector<8x32xf32>,
    %c8 = arith.constant 8 : index
    %c0_36 = arith.constant 0 : index
    %68 = vector.load %arg10[%c8, %c0_36] : memref<72x128xf32, #tpu.memory_space<vmem>>, vector<8x128xf32>
    %cst_37 = arith.constant dense<0.000000e+00> : vector<8x128xf32>
    %69 = tpu.matmul %43, %1, %cst_37 {dimension_numbers = #tpu.dot_dimension_numbers<[1], [0], [0], [1], [0, 0, 1, 1], [], []>} : vector<8x32xf32>, vector<32x128xf32>, vector<8x128xf32> -> vector<8x128xf32>
    %70 = arith.addf %68, %69 : vector<8x128xf32>
    %cst_38 = arith.constant 5.000000e-01 : f32
    %71 = vector.broadcast %cst_38 : f32 to vector<8x128xf32>
    %72 = arith.mulf %71, %70 : vector<8x128xf32>
    %73 = arith.select %12, %70, %72 : vector<8x128xi1>, vector<8x128xf32>
    %74 = math.tanh %73 : vector<8x128xf32>
    %cst_39 = arith.constant 1.000000e+00 : f32
    %75 = vector.broadcast %cst_39 : f32 to vector<8x128xf32>
    %76 = arith.addf %74, %75 : vector<8x128xf32>
    %cst_40 = arith.constant 5.000000e-01 : f32
    %77 = vector.broadcast %cst_40 : f32 to vector<8x128xf32>
    %78 = arith.mulf %77, %76 : vector<8x128xf32>
    %79 = arith.select %12, %74, %78 : vector<8x128xi1>, vector<8x128xf32>
    %80 = vector.extract_strided_slice %79 {offsets = [0, 0], sizes = [8, 32], strides = [1, 1]} : vector<8x128xf32> to vector<8x32xf32>
    %81 = vector.extract_strided_slice %79 {offsets = [0, 32], sizes = [8, 32], strides = [1, 1]} : vector<8x128xf32> to vector<8x32xf32>
    %82 = vector.extract_strided_slice %79 {offsets = [0, 64], sizes = [8, 32], strides = [1, 1]} : vector<8x128xf32> to vector<8x32xf32>
    %83 = vector.extract_strided_slice %79 {offsets = [0, 96], sizes = [8, 32], strides = [1, 1]} : vector<8x128xf32> to vector<8x32xf32>
    %84 = arith.mulf %81, %41 : vector<8x32xf32>
    %85 = arith.mulf %80, %82 : vector<8x32xf32>
    %86 = arith.addf %84, %85 : vector<8x32xf32>
    %87 = math.tanh %86 : vector<8x32xf32>
    %88 = arith.mulf %83, %87 : vector<8x32xf32>
    %cst_41 = arith.constant dense<0.000000e+00> : vector<8x128xf32>
    %89 = tpu.matmul %88, %2, %cst_41 {dimension_numbers = #tpu.dot_dimension_numbers<[1], [0], [0], [1], [0, 0, 1, 1], [], []>} : vector<8x32xf32>, vector<32x128xf32>, vector<8x128xf32> -> vector<8x128xf32>
    %cst_42 = arith.constant dense<0.000000e+00> : vector<8x128xf32>
    %90 = tpu.matmul %66, %3, %cst_42 {dimension_numbers = #tpu.dot_dimension_numbers<[1], [0], [0], [1], [0, 0, 1, 1], [], []>} : vector<8x32xf32>, vector<32x128xf32>, vector<8x128xf32> -> vector<8x128xf32>
    %91 = arith.addf %89, %90 : vector<8x128xf32>
    %92 = vector.broadcast %4 : vector<1x128xf32> to vector<8x128xf32>
    %93 = arith.addf %91, %92 : vector<8x128xf32>
    %cst_43 = arith.constant 5.000000e-01 : f32
    %94 = vector.broadcast %cst_43 : f32 to vector<8x128xf32>
    %95 = arith.mulf %94, %93 : vector<8x128xf32>
    %96 = arith.select %12, %93, %95 : vector<8x128xi1>, vector<8x128xf32>
    %97 = math.tanh %96 : vector<8x128xf32>
    %cst_44 = arith.constant 1.000000e+00 : f32
    %98 = vector.broadcast %cst_44 : f32 to vector<8x128xf32>
    %99 = arith.addf %97, %98 : vector<8x128xf32>
    %cst_45 = arith.constant 5.000000e-01 : f32
    %100 = vector.broadcast %cst_45 : f32 to vector<8x128xf32>
    %101 = arith.mulf %100, %99 : vector<8x128xf32>
    %102 = arith.select %12, %97, %101 : vector<8x128xi1>, vector<8x128xf32>
    %103 = vector.extract_strided_slice %102 {offsets = [0, 0], sizes = [8, 32], strides = [1, 1]} : vector<8x128xf32> to vector<8x32xf32>
    %104 = vector.extract_strided_slice %102 {offsets = [0, 32], sizes = [8, 32], strides = [1, 1]} : vector<8x128xf32> to vector<8x32xf32>
    %105 = vector.extract_strided_slice %102 {offsets = [0, 64], sizes = [8, 32], strides = [1, 1]} : vector<8x128xf32> to vector<8x32xf32>
    %106 = vector.extract_strided_slice %102 {offsets = [0, 96], sizes = [8, 32], strides = [1, 1]} : vector<8x128xf32> to vector<8x32xf32>
    %107 = arith.mulf %104, %64 : vector<8x32xf32>
    %108 = arith.mulf %103, %105 : vector<8x32xf32>
    %109 = arith.addf %107, %108 : vector<8x32xf32>
    %110 = math.tanh %109 : vector<8x32xf32>
    %111 = arith.mulf %106, %110 : vector<8x32xf32>
    %c8_46 = arith.constant 8 : index
    %c0_47 = arith.constant 0 : index
    %112 = vector.load %arg11[%c8_46, %c0_47] : memref<72x32xf32, #tpu.memory_space<vmem>>, vector<8x32xf32>
    tpu.vector_store %arg11[%c8_46, %c0_47], %111 {strides = array<i32>} : memref<72x32xf32, #tpu.memory_space<vmem>>, vector<8x32xf32>,
    %c16 = arith.constant 16 : index
    %c0_48 = arith.constant 0 : index
    %113 = vector.load %arg10[%c16, %c0_48] : memref<72x128xf32, #tpu.memory_space<vmem>>, vector<8x128xf32>
    %cst_49 = arith.constant dense<0.000000e+00> : vector<8x128xf32>
    %114 = tpu.matmul %88, %1, %cst_49 {dimension_numbers = #tpu.dot_dimension_numbers<[1], [0], [0], [1], [0, 0, 1, 1], [], []>} : vector<8x32xf32>, vector<32x128xf32>, vector<8x128xf32> -> vector<8x128xf32>
    %115 = arith.addf %113, %114 : vector<8x128xf32>
    %cst_50 = arith.constant 5.000000e-01 : f32
    %116 = vector.broadcast %cst_50 : f32 to vector<8x128xf32>
    %117 = arith.mulf %116, %115 : vector<8x128xf32>
    %118 = arith.select %12, %115, %117 : vector<8x128xi1>, vector<8x128xf32>
    %119 = math.tanh %118 : vector<8x128xf32>
    %cst_51 = arith.constant 1.000000e+00 : f32
    %120 = vector.broadcast %cst_51 : f32 to vector<8x128xf32>
    %121 = arith.addf %119, %120 : vector<8x128xf32>
    %cst_52 = arith.constant 5.000000e-01 : f32
    %122 = vector.broadcast %cst_52 : f32 to vector<8x128xf32>
    %123 = arith.mulf %122, %121 : vector<8x128xf32>
    %124 = arith.select %12, %119, %123 : vector<8x128xi1>, vector<8x128xf32>
    %125 = vector.extract_strided_slice %124 {offsets = [0, 0], sizes = [8, 32], strides = [1, 1]} : vector<8x128xf32> to vector<8x32xf32>
    %126 = vector.extract_strided_slice %124 {offsets = [0, 32], sizes = [8, 32], strides = [1, 1]} : vector<8x128xf32> to vector<8x32xf32>
    %127 = vector.extract_strided_slice %124 {offsets = [0, 64], sizes = [8, 32], strides = [1, 1]} : vector<8x128xf32> to vector<8x32xf32>
    %128 = vector.extract_strided_slice %124 {offsets = [0, 96], sizes = [8, 32], strides = [1, 1]} : vector<8x128xf32> to vector<8x32xf32>
    %129 = arith.mulf %126, %86 : vector<8x32xf32>
    %130 = arith.mulf %125, %127 : vector<8x32xf32>
    %131 = arith.addf %129, %130 : vector<8x32xf32>
    %132 = math.tanh %131 : vector<8x32xf32>
    %133 = arith.mulf %128, %132 : vector<8x32xf32>
    %cst_53 = arith.constant dense<0.000000e+00> : vector<8x128xf32>
    %134 = tpu.matmul %133, %2, %cst_53 {dimension_numbers = #tpu.dot_dimension_numbers<[1], [0], [0], [1], [0, 0, 1, 1], [], []>} : vector<8x32xf32>, vector<32x128xf32>, vector<8x128xf32> -> vector<8x128xf32>
    %cst_54 = arith.constant dense<0.000000e+00> : vector<8x128xf32>
    %135 = tpu.matmul %111, %3, %cst_54 {dimension_numbers = #tpu.dot_dimension_numbers<[1], [0], [0], [1], [0, 0, 1, 1], [], []>} : vector<8x32xf32>, vector<32x128xf32>, vector<8x128xf32> -> vector<8x128xf32>
    %136 = arith.addf %134, %135 : vector<8x128xf32>
    %137 = vector.broadcast %4 : vector<1x128xf32> to vector<8x128xf32>
    %138 = arith.addf %136, %137 : vector<8x128xf32>
    %cst_55 = arith.constant 5.000000e-01 : f32
    %139 = vector.broadcast %cst_55 : f32 to vector<8x128xf32>
    %140 = arith.mulf %139, %138 : vector<8x128xf32>
    %141 = arith.select %12, %138, %140 : vector<8x128xi1>, vector<8x128xf32>
    %142 = math.tanh %141 : vector<8x128xf32>
    %cst_56 = arith.constant 1.000000e+00 : f32
    %143 = vector.broadcast %cst_56 : f32 to vector<8x128xf32>
    %144 = arith.addf %142, %143 : vector<8x128xf32>
    %cst_57 = arith.constant 5.000000e-01 : f32
    %145 = vector.broadcast %cst_57 : f32 to vector<8x128xf32>
    %146 = arith.mulf %145, %144 : vector<8x128xf32>
    %147 = arith.select %12, %142, %146 : vector<8x128xi1>, vector<8x128xf32>
    %148 = vector.extract_strided_slice %147 {offsets = [0, 0], sizes = [8, 32], strides = [1, 1]} : vector<8x128xf32> to vector<8x32xf32>
    %149 = vector.extract_strided_slice %147 {offsets = [0, 32], sizes = [8, 32], strides = [1, 1]} : vector<8x128xf32> to vector<8x32xf32>
    %150 = vector.extract_strided_slice %147 {offsets = [0, 64], sizes = [8, 32], strides = [1, 1]} : vector<8x128xf32> to vector<8x32xf32>
    %151 = vector.extract_strided_slice %147 {offsets = [0, 96], sizes = [8, 32], strides = [1, 1]} : vector<8x128xf32> to vector<8x32xf32>
    %152 = arith.mulf %149, %109 : vector<8x32xf32>
    %153 = arith.mulf %148, %150 : vector<8x32xf32>
    %154 = arith.addf %152, %153 : vector<8x32xf32>
    %155 = math.tanh %154 : vector<8x32xf32>
    %156 = arith.mulf %151, %155 : vector<8x32xf32>
    %c16_58 = arith.constant 16 : index
    %c0_59 = arith.constant 0 : index
    %157 = vector.load %arg11[%c16_58, %c0_59] : memref<72x32xf32, #tpu.memory_space<vmem>>, vector<8x32xf32>
    tpu.vector_store %arg11[%c16_58, %c0_59], %156 {strides = array<i32>} : memref<72x32xf32, #tpu.memory_space<vmem>>, vector<8x32xf32>,
    %c24 = arith.constant 24 : index
    %c0_60 = arith.constant 0 : index
    %158 = vector.load %arg10[%c24, %c0_60] : memref<72x128xf32, #tpu.memory_space<vmem>>, vector<8x128xf32>
    %cst_61 = arith.constant dense<0.000000e+00> : vector<8x128xf32>
    %159 = tpu.matmul %133, %1, %cst_61 {dimension_numbers = #tpu.dot_dimension_numbers<[1], [0], [0], [1], [0, 0, 1, 1], [], []>} : vector<8x32xf32>, vector<32x128xf32>, vector<8x128xf32> -> vector<8x128xf32>
    %160 = arith.addf %158, %159 : vector<8x128xf32>
    %cst_62 = arith.constant 5.000000e-01 : f32
    %161 = vector.broadcast %cst_62 : f32 to vector<8x128xf32>
    %162 = arith.mulf %161, %160 : vector<8x128xf32>
    %163 = arith.select %12, %160, %162 : vector<8x128xi1>, vector<8x128xf32>
    %164 = math.tanh %163 : vector<8x128xf32>
    %cst_63 = arith.constant 1.000000e+00 : f32
    %165 = vector.broadcast %cst_63 : f32 to vector<8x128xf32>
    %166 = arith.addf %164, %165 : vector<8x128xf32>
    %cst_64 = arith.constant 5.000000e-01 : f32
    %167 = vector.broadcast %cst_64 : f32 to vector<8x128xf32>
    %168 = arith.mulf %167, %166 : vector<8x128xf32>
    %169 = arith.select %12, %164, %168 : vector<8x128xi1>, vector<8x128xf32>
    %170 = vector.extract_strided_slice %169 {offsets = [0, 0], sizes = [8, 32], strides = [1, 1]} : vector<8x128xf32> to vector<8x32xf32>
    %171 = vector.extract_strided_slice %169 {offsets = [0, 32], sizes = [8, 32], strides = [1, 1]} : vector<8x128xf32> to vector<8x32xf32>
    %172 = vector.extract_strided_slice %169 {offsets = [0, 64], sizes = [8, 32], strides = [1, 1]} : vector<8x128xf32> to vector<8x32xf32>
    %173 = vector.extract_strided_slice %169 {offsets = [0, 96], sizes = [8, 32], strides = [1, 1]} : vector<8x128xf32> to vector<8x32xf32>
    %174 = arith.mulf %171, %131 : vector<8x32xf32>
    %175 = arith.mulf %170, %172 : vector<8x32xf32>
    %176 = arith.addf %174, %175 : vector<8x32xf32>
    %177 = math.tanh %176 : vector<8x32xf32>
    %178 = arith.mulf %173, %177 : vector<8x32xf32>
    %cst_65 = arith.constant dense<0.000000e+00> : vector<8x128xf32>
    %179 = tpu.matmul %178, %2, %cst_65 {dimension_numbers = #tpu.dot_dimension_numbers<[1], [0], [0], [1], [0, 0, 1, 1], [], []>} : vector<8x32xf32>, vector<32x128xf32>, vector<8x128xf32> -> vector<8x128xf32>
    %cst_66 = arith.constant dense<0.000000e+00> : vector<8x128xf32>
    %180 = tpu.matmul %156, %3, %cst_66 {dimension_numbers = #tpu.dot_dimension_numbers<[1], [0], [0], [1], [0, 0, 1, 1], [], []>} : vector<8x32xf32>, vector<32x128xf32>, vector<8x128xf32> -> vector<8x128xf32>
    %181 = arith.addf %179, %180 : vector<8x128xf32>
    %182 = vector.broadcast %4 : vector<1x128xf32> to vector<8x128xf32>
    %183 = arith.addf %181, %182 : vector<8x128xf32>
    %cst_67 = arith.constant 5.000000e-01 : f32
    %184 = vector.broadcast %cst_67 : f32 to vector<8x128xf32>
    %185 = arith.mulf %184, %183 : vector<8x128xf32>
    %186 = arith.select %12, %183, %185 : vector<8x128xi1>, vector<8x128xf32>
    %187 = math.tanh %186 : vector<8x128xf32>
    %cst_68 = arith.constant 1.000000e+00 : f32
    %188 = vector.broadcast %cst_68 : f32 to vector<8x128xf32>
    %189 = arith.addf %187, %188 : vector<8x128xf32>
    %cst_69 = arith.constant 5.000000e-01 : f32
    %190 = vector.broadcast %cst_69 : f32 to vector<8x128xf32>
    %191 = arith.mulf %190, %189 : vector<8x128xf32>
    %192 = arith.select %12, %187, %191 : vector<8x128xi1>, vector<8x128xf32>
    %193 = vector.extract_strided_slice %192 {offsets = [0, 0], sizes = [8, 32], strides = [1, 1]} : vector<8x128xf32> to vector<8x32xf32>
    %194 = vector.extract_strided_slice %192 {offsets = [0, 32], sizes = [8, 32], strides = [1, 1]} : vector<8x128xf32> to vector<8x32xf32>
    %195 = vector.extract_strided_slice %192 {offsets = [0, 64], sizes = [8, 32], strides = [1, 1]} : vector<8x128xf32> to vector<8x32xf32>
    %196 = vector.extract_strided_slice %192 {offsets = [0, 96], sizes = [8, 32], strides = [1, 1]} : vector<8x128xf32> to vector<8x32xf32>
    %197 = arith.mulf %194, %154 : vector<8x32xf32>
    %198 = arith.mulf %193, %195 : vector<8x32xf32>
    %199 = arith.addf %197, %198 : vector<8x32xf32>
    %200 = math.tanh %199 : vector<8x32xf32>
    %201 = arith.mulf %196, %200 : vector<8x32xf32>
    %c24_70 = arith.constant 24 : index
    %c0_71 = arith.constant 0 : index
    %202 = vector.load %arg11[%c24_70, %c0_71] : memref<72x32xf32, #tpu.memory_space<vmem>>, vector<8x32xf32>
    tpu.vector_store %arg11[%c24_70, %c0_71], %201 {strides = array<i32>} : memref<72x32xf32, #tpu.memory_space<vmem>>, vector<8x32xf32>,
    %c32 = arith.constant 32 : index
    %c0_72 = arith.constant 0 : index
    %203 = vector.load %arg10[%c32, %c0_72] : memref<72x128xf32, #tpu.memory_space<vmem>>, vector<8x128xf32>
    %cst_73 = arith.constant dense<0.000000e+00> : vector<8x128xf32>
    %204 = tpu.matmul %178, %1, %cst_73 {dimension_numbers = #tpu.dot_dimension_numbers<[1], [0], [0], [1], [0, 0, 1, 1], [], []>} : vector<8x32xf32>, vector<32x128xf32>, vector<8x128xf32> -> vector<8x128xf32>
    %205 = arith.addf %203, %204 : vector<8x128xf32>
    %cst_74 = arith.constant 5.000000e-01 : f32
    %206 = vector.broadcast %cst_74 : f32 to vector<8x128xf32>
    %207 = arith.mulf %206, %205 : vector<8x128xf32>
    %208 = arith.select %12, %205, %207 : vector<8x128xi1>, vector<8x128xf32>
    %209 = math.tanh %208 : vector<8x128xf32>
    %cst_75 = arith.constant 1.000000e+00 : f32
    %210 = vector.broadcast %cst_75 : f32 to vector<8x128xf32>
    %211 = arith.addf %209, %210 : vector<8x128xf32>
    %cst_76 = arith.constant 5.000000e-01 : f32
    %212 = vector.broadcast %cst_76 : f32 to vector<8x128xf32>
    %213 = arith.mulf %212, %211 : vector<8x128xf32>
    %214 = arith.select %12, %209, %213 : vector<8x128xi1>, vector<8x128xf32>
    %215 = vector.extract_strided_slice %214 {offsets = [0, 0], sizes = [8, 32], strides = [1, 1]} : vector<8x128xf32> to vector<8x32xf32>
    %216 = vector.extract_strided_slice %214 {offsets = [0, 32], sizes = [8, 32], strides = [1, 1]} : vector<8x128xf32> to vector<8x32xf32>
    %217 = vector.extract_strided_slice %214 {offsets = [0, 64], sizes = [8, 32], strides = [1, 1]} : vector<8x128xf32> to vector<8x32xf32>
    %218 = vector.extract_strided_slice %214 {offsets = [0, 96], sizes = [8, 32], strides = [1, 1]} : vector<8x128xf32> to vector<8x32xf32>
    %219 = arith.mulf %216, %176 : vector<8x32xf32>
    %220 = arith.mulf %215, %217 : vector<8x32xf32>
    %221 = arith.addf %219, %220 : vector<8x32xf32>
    %222 = math.tanh %221 : vector<8x32xf32>
    %223 = arith.mulf %218, %222 : vector<8x32xf32>
    %cst_77 = arith.constant dense<0.000000e+00> : vector<8x128xf32>
    %224 = tpu.matmul %223, %2, %cst_77 {dimension_numbers = #tpu.dot_dimension_numbers<[1], [0], [0], [1], [0, 0, 1, 1], [], []>} : vector<8x32xf32>, vector<32x128xf32>, vector<8x128xf32> -> vector<8x128xf32>
    %cst_78 = arith.constant dense<0.000000e+00> : vector<8x128xf32>
    %225 = tpu.matmul %201, %3, %cst_78 {dimension_numbers = #tpu.dot_dimension_numbers<[1], [0], [0], [1], [0, 0, 1, 1], [], []>} : vector<8x32xf32>, vector<32x128xf32>, vector<8x128xf32> -> vector<8x128xf32>
    %226 = arith.addf %224, %225 : vector<8x128xf32>
    %227 = vector.broadcast %4 : vector<1x128xf32> to vector<8x128xf32>
    %228 = arith.addf %226, %227 : vector<8x128xf32>
    %cst_79 = arith.constant 5.000000e-01 : f32
    %229 = vector.broadcast %cst_79 : f32 to vector<8x128xf32>
    %230 = arith.mulf %229, %228 : vector<8x128xf32>
    %231 = arith.select %12, %228, %230 : vector<8x128xi1>, vector<8x128xf32>
    %232 = math.tanh %231 : vector<8x128xf32>
    %cst_80 = arith.constant 1.000000e+00 : f32
    %233 = vector.broadcast %cst_80 : f32 to vector<8x128xf32>
    %234 = arith.addf %232, %233 : vector<8x128xf32>
    %cst_81 = arith.constant 5.000000e-01 : f32
    %235 = vector.broadcast %cst_81 : f32 to vector<8x128xf32>
    %236 = arith.mulf %235, %234 : vector<8x128xf32>
    %237 = arith.select %12, %232, %236 : vector<8x128xi1>, vector<8x128xf32>
    %238 = vector.extract_strided_slice %237 {offsets = [0, 0], sizes = [8, 32], strides = [1, 1]} : vector<8x128xf32> to vector<8x32xf32>
    %239 = vector.extract_strided_slice %237 {offsets = [0, 32], sizes = [8, 32], strides = [1, 1]} : vector<8x128xf32> to vector<8x32xf32>
    %240 = vector.extract_strided_slice %237 {offsets = [0, 64], sizes = [8, 32], strides = [1, 1]} : vector<8x128xf32> to vector<8x32xf32>
    %241 = vector.extract_strided_slice %237 {offsets = [0, 96], sizes = [8, 32], strides = [1, 1]} : vector<8x128xf32> to vector<8x32xf32>
    %242 = arith.mulf %239, %199 : vector<8x32xf32>
    %243 = arith.mulf %238, %240 : vector<8x32xf32>
    %244 = arith.addf %242, %243 : vector<8x32xf32>
    %245 = math.tanh %244 : vector<8x32xf32>
    %246 = arith.mulf %241, %245 : vector<8x32xf32>
    %c32_82 = arith.constant 32 : index
    %c0_83 = arith.constant 0 : index
    %247 = vector.load %arg11[%c32_82, %c0_83] : memref<72x32xf32, #tpu.memory_space<vmem>>, vector<8x32xf32>
    tpu.vector_store %arg11[%c32_82, %c0_83], %246 {strides = array<i32>} : memref<72x32xf32, #tpu.memory_space<vmem>>, vector<8x32xf32>,
    %c40 = arith.constant 40 : index
    %c0_84 = arith.constant 0 : index
    %248 = vector.load %arg10[%c40, %c0_84] : memref<72x128xf32, #tpu.memory_space<vmem>>, vector<8x128xf32>
    %cst_85 = arith.constant dense<0.000000e+00> : vector<8x128xf32>
    %249 = tpu.matmul %223, %1, %cst_85 {dimension_numbers = #tpu.dot_dimension_numbers<[1], [0], [0], [1], [0, 0, 1, 1], [], []>} : vector<8x32xf32>, vector<32x128xf32>, vector<8x128xf32> -> vector<8x128xf32>
    %250 = arith.addf %248, %249 : vector<8x128xf32>
    %cst_86 = arith.constant 5.000000e-01 : f32
    %251 = vector.broadcast %cst_86 : f32 to vector<8x128xf32>
    %252 = arith.mulf %251, %250 : vector<8x128xf32>
    %253 = arith.select %12, %250, %252 : vector<8x128xi1>, vector<8x128xf32>
    %254 = math.tanh %253 : vector<8x128xf32>
    %cst_87 = arith.constant 1.000000e+00 : f32
    %255 = vector.broadcast %cst_87 : f32 to vector<8x128xf32>
    %256 = arith.addf %254, %255 : vector<8x128xf32>
    %cst_88 = arith.constant 5.000000e-01 : f32
    %257 = vector.broadcast %cst_88 : f32 to vector<8x128xf32>
    %258 = arith.mulf %257, %256 : vector<8x128xf32>
    %259 = arith.select %12, %254, %258 : vector<8x128xi1>, vector<8x128xf32>
    %260 = vector.extract_strided_slice %259 {offsets = [0, 0], sizes = [8, 32], strides = [1, 1]} : vector<8x128xf32> to vector<8x32xf32>
    %261 = vector.extract_strided_slice %259 {offsets = [0, 32], sizes = [8, 32], strides = [1, 1]} : vector<8x128xf32> to vector<8x32xf32>
    %262 = vector.extract_strided_slice %259 {offsets = [0, 64], sizes = [8, 32], strides = [1, 1]} : vector<8x128xf32> to vector<8x32xf32>
    %263 = vector.extract_strided_slice %259 {offsets = [0, 96], sizes = [8, 32], strides = [1, 1]} : vector<8x128xf32> to vector<8x32xf32>
    %264 = arith.mulf %261, %221 : vector<8x32xf32>
    %265 = arith.mulf %260, %262 : vector<8x32xf32>
    %266 = arith.addf %264, %265 : vector<8x32xf32>
    %267 = math.tanh %266 : vector<8x32xf32>
    %268 = arith.mulf %263, %267 : vector<8x32xf32>
    %cst_89 = arith.constant dense<0.000000e+00> : vector<8x128xf32>
    %269 = tpu.matmul %268, %2, %cst_89 {dimension_numbers = #tpu.dot_dimension_numbers<[1], [0], [0], [1], [0, 0, 1, 1], [], []>} : vector<8x32xf32>, vector<32x128xf32>, vector<8x128xf32> -> vector<8x128xf32>
    %cst_90 = arith.constant dense<0.000000e+00> : vector<8x128xf32>
    %270 = tpu.matmul %246, %3, %cst_90 {dimension_numbers = #tpu.dot_dimension_numbers<[1], [0], [0], [1], [0, 0, 1, 1], [], []>} : vector<8x32xf32>, vector<32x128xf32>, vector<8x128xf32> -> vector<8x128xf32>
    %271 = arith.addf %269, %270 : vector<8x128xf32>
    %272 = vector.broadcast %4 : vector<1x128xf32> to vector<8x128xf32>
    %273 = arith.addf %271, %272 : vector<8x128xf32>
    %cst_91 = arith.constant 5.000000e-01 : f32
    %274 = vector.broadcast %cst_91 : f32 to vector<8x128xf32>
    %275 = arith.mulf %274, %273 : vector<8x128xf32>
    %276 = arith.select %12, %273, %275 : vector<8x128xi1>, vector<8x128xf32>
    %277 = math.tanh %276 : vector<8x128xf32>
    %cst_92 = arith.constant 1.000000e+00 : f32
    %278 = vector.broadcast %cst_92 : f32 to vector<8x128xf32>
    %279 = arith.addf %277, %278 : vector<8x128xf32>
    %cst_93 = arith.constant 5.000000e-01 : f32
    %280 = vector.broadcast %cst_93 : f32 to vector<8x128xf32>
    %281 = arith.mulf %280, %279 : vector<8x128xf32>
    %282 = arith.select %12, %277, %281 : vector<8x128xi1>, vector<8x128xf32>
    %283 = vector.extract_strided_slice %282 {offsets = [0, 0], sizes = [8, 32], strides = [1, 1]} : vector<8x128xf32> to vector<8x32xf32>
    %284 = vector.extract_strided_slice %282 {offsets = [0, 32], sizes = [8, 32], strides = [1, 1]} : vector<8x128xf32> to vector<8x32xf32>
    %285 = vector.extract_strided_slice %282 {offsets = [0, 64], sizes = [8, 32], strides = [1, 1]} : vector<8x128xf32> to vector<8x32xf32>
    %286 = vector.extract_strided_slice %282 {offsets = [0, 96], sizes = [8, 32], strides = [1, 1]} : vector<8x128xf32> to vector<8x32xf32>
    %287 = arith.mulf %284, %244 : vector<8x32xf32>
    %288 = arith.mulf %283, %285 : vector<8x32xf32>
    %289 = arith.addf %287, %288 : vector<8x32xf32>
    %290 = math.tanh %289 : vector<8x32xf32>
    %291 = arith.mulf %286, %290 : vector<8x32xf32>
    %c40_94 = arith.constant 40 : index
    %c0_95 = arith.constant 0 : index
    %292 = vector.load %arg11[%c40_94, %c0_95] : memref<72x32xf32, #tpu.memory_space<vmem>>, vector<8x32xf32>
    tpu.vector_store %arg11[%c40_94, %c0_95], %291 {strides = array<i32>} : memref<72x32xf32, #tpu.memory_space<vmem>>, vector<8x32xf32>,
    %c48 = arith.constant 48 : index
    %c0_96 = arith.constant 0 : index
    %293 = vector.load %arg10[%c48, %c0_96] : memref<72x128xf32, #tpu.memory_space<vmem>>, vector<8x128xf32>
    %cst_97 = arith.constant dense<0.000000e+00> : vector<8x128xf32>
    %294 = tpu.matmul %268, %1, %cst_97 {dimension_numbers = #tpu.dot_dimension_numbers<[1], [0], [0], [1], [0, 0, 1, 1], [], []>} : vector<8x32xf32>, vector<32x128xf32>, vector<8x128xf32> -> vector<8x128xf32>
    %295 = arith.addf %293, %294 : vector<8x128xf32>
    %cst_98 = arith.constant 5.000000e-01 : f32
    %296 = vector.broadcast %cst_98 : f32 to vector<8x128xf32>
    %297 = arith.mulf %296, %295 : vector<8x128xf32>
    %298 = arith.select %12, %295, %297 : vector<8x128xi1>, vector<8x128xf32>
    %299 = math.tanh %298 : vector<8x128xf32>
    %cst_99 = arith.constant 1.000000e+00 : f32
    %300 = vector.broadcast %cst_99 : f32 to vector<8x128xf32>
    %301 = arith.addf %299, %300 : vector<8x128xf32>
    %cst_100 = arith.constant 5.000000e-01 : f32
    %302 = vector.broadcast %cst_100 : f32 to vector<8x128xf32>
    %303 = arith.mulf %302, %301 : vector<8x128xf32>
    %304 = arith.select %12, %299, %303 : vector<8x128xi1>, vector<8x128xf32>
    %305 = vector.extract_strided_slice %304 {offsets = [0, 0], sizes = [8, 32], strides = [1, 1]} : vector<8x128xf32> to vector<8x32xf32>
    %306 = vector.extract_strided_slice %304 {offsets = [0, 32], sizes = [8, 32], strides = [1, 1]} : vector<8x128xf32> to vector<8x32xf32>
    %307 = vector.extract_strided_slice %304 {offsets = [0, 64], sizes = [8, 32], strides = [1, 1]} : vector<8x128xf32> to vector<8x32xf32>
    %308 = vector.extract_strided_slice %304 {offsets = [0, 96], sizes = [8, 32], strides = [1, 1]} : vector<8x128xf32> to vector<8x32xf32>
    %309 = arith.mulf %306, %266 : vector<8x32xf32>
    %310 = arith.mulf %305, %307 : vector<8x32xf32>
    %311 = arith.addf %309, %310 : vector<8x32xf32>
    %312 = math.tanh %311 : vector<8x32xf32>
    %313 = arith.mulf %308, %312 : vector<8x32xf32>
    %cst_101 = arith.constant dense<0.000000e+00> : vector<8x128xf32>
    %314 = tpu.matmul %313, %2, %cst_101 {dimension_numbers = #tpu.dot_dimension_numbers<[1], [0], [0], [1], [0, 0, 1, 1], [], []>} : vector<8x32xf32>, vector<32x128xf32>, vector<8x128xf32> -> vector<8x128xf32>
    %cst_102 = arith.constant dense<0.000000e+00> : vector<8x128xf32>
    %315 = tpu.matmul %291, %3, %cst_102 {dimension_numbers = #tpu.dot_dimension_numbers<[1], [0], [0], [1], [0, 0, 1, 1], [], []>} : vector<8x32xf32>, vector<32x128xf32>, vector<8x128xf32> -> vector<8x128xf32>
    %316 = arith.addf %314, %315 : vector<8x128xf32>
    %317 = vector.broadcast %4 : vector<1x128xf32> to vector<8x128xf32>
    %318 = arith.addf %316, %317 : vector<8x128xf32>
    %cst_103 = arith.constant 5.000000e-01 : f32
    %319 = vector.broadcast %cst_103 : f32 to vector<8x128xf32>
    %320 = arith.mulf %319, %318 : vector<8x128xf32>
    %321 = arith.select %12, %318, %320 : vector<8x128xi1>, vector<8x128xf32>
    %322 = math.tanh %321 : vector<8x128xf32>
    %cst_104 = arith.constant 1.000000e+00 : f32
    %323 = vector.broadcast %cst_104 : f32 to vector<8x128xf32>
    %324 = arith.addf %322, %323 : vector<8x128xf32>
    %cst_105 = arith.constant 5.000000e-01 : f32
    %325 = vector.broadcast %cst_105 : f32 to vector<8x128xf32>
    %326 = arith.mulf %325, %324 : vector<8x128xf32>
    %327 = arith.select %12, %322, %326 : vector<8x128xi1>, vector<8x128xf32>
    %328 = vector.extract_strided_slice %327 {offsets = [0, 0], sizes = [8, 32], strides = [1, 1]} : vector<8x128xf32> to vector<8x32xf32>
    %329 = vector.extract_strided_slice %327 {offsets = [0, 32], sizes = [8, 32], strides = [1, 1]} : vector<8x128xf32> to vector<8x32xf32>
    %330 = vector.extract_strided_slice %327 {offsets = [0, 64], sizes = [8, 32], strides = [1, 1]} : vector<8x128xf32> to vector<8x32xf32>
    %331 = vector.extract_strided_slice %327 {offsets = [0, 96], sizes = [8, 32], strides = [1, 1]} : vector<8x128xf32> to vector<8x32xf32>
    %332 = arith.mulf %329, %289 : vector<8x32xf32>
    %333 = arith.mulf %328, %330 : vector<8x32xf32>
    %334 = arith.addf %332, %333 : vector<8x32xf32>
    %335 = math.tanh %334 : vector<8x32xf32>
    %336 = arith.mulf %331, %335 : vector<8x32xf32>
    %c48_106 = arith.constant 48 : index
    %c0_107 = arith.constant 0 : index
    %337 = vector.load %arg11[%c48_106, %c0_107] : memref<72x32xf32, #tpu.memory_space<vmem>>, vector<8x32xf32>
    tpu.vector_store %arg11[%c48_106, %c0_107], %336 {strides = array<i32>} : memref<72x32xf32, #tpu.memory_space<vmem>>, vector<8x32xf32>,
    %c56 = arith.constant 56 : index
    %c0_108 = arith.constant 0 : index
    %338 = vector.load %arg10[%c56, %c0_108] : memref<72x128xf32, #tpu.memory_space<vmem>>, vector<8x128xf32>
    %cst_109 = arith.constant dense<0.000000e+00> : vector<8x128xf32>
    %339 = tpu.matmul %313, %1, %cst_109 {dimension_numbers = #tpu.dot_dimension_numbers<[1], [0], [0], [1], [0, 0, 1, 1], [], []>} : vector<8x32xf32>, vector<32x128xf32>, vector<8x128xf32> -> vector<8x128xf32>
    %340 = arith.addf %338, %339 : vector<8x128xf32>
    %cst_110 = arith.constant 5.000000e-01 : f32
    %341 = vector.broadcast %cst_110 : f32 to vector<8x128xf32>
    %342 = arith.mulf %341, %340 : vector<8x128xf32>
    %343 = arith.select %12, %340, %342 : vector<8x128xi1>, vector<8x128xf32>
    %344 = math.tanh %343 : vector<8x128xf32>
    %cst_111 = arith.constant 1.000000e+00 : f32
    %345 = vector.broadcast %cst_111 : f32 to vector<8x128xf32>
    %346 = arith.addf %344, %345 : vector<8x128xf32>
    %cst_112 = arith.constant 5.000000e-01 : f32
    %347 = vector.broadcast %cst_112 : f32 to vector<8x128xf32>
    %348 = arith.mulf %347, %346 : vector<8x128xf32>
    %349 = arith.select %12, %344, %348 : vector<8x128xi1>, vector<8x128xf32>
    %350 = vector.extract_strided_slice %349 {offsets = [0, 0], sizes = [8, 32], strides = [1, 1]} : vector<8x128xf32> to vector<8x32xf32>
    %351 = vector.extract_strided_slice %349 {offsets = [0, 32], sizes = [8, 32], strides = [1, 1]} : vector<8x128xf32> to vector<8x32xf32>
    %352 = vector.extract_strided_slice %349 {offsets = [0, 64], sizes = [8, 32], strides = [1, 1]} : vector<8x128xf32> to vector<8x32xf32>
    %353 = vector.extract_strided_slice %349 {offsets = [0, 96], sizes = [8, 32], strides = [1, 1]} : vector<8x128xf32> to vector<8x32xf32>
    %354 = arith.mulf %351, %311 : vector<8x32xf32>
    %355 = arith.mulf %350, %352 : vector<8x32xf32>
    %356 = arith.addf %354, %355 : vector<8x32xf32>
    %357 = math.tanh %356 : vector<8x32xf32>
    %358 = arith.mulf %353, %357 : vector<8x32xf32>
    %cst_113 = arith.constant dense<0.000000e+00> : vector<8x128xf32>
    %359 = tpu.matmul %358, %2, %cst_113 {dimension_numbers = #tpu.dot_dimension_numbers<[1], [0], [0], [1], [0, 0, 1, 1], [], []>} : vector<8x32xf32>, vector<32x128xf32>, vector<8x128xf32> -> vector<8x128xf32>
    %cst_114 = arith.constant dense<0.000000e+00> : vector<8x128xf32>
    %360 = tpu.matmul %336, %3, %cst_114 {dimension_numbers = #tpu.dot_dimension_numbers<[1], [0], [0], [1], [0, 0, 1, 1], [], []>} : vector<8x32xf32>, vector<32x128xf32>, vector<8x128xf32> -> vector<8x128xf32>
    %361 = arith.addf %359, %360 : vector<8x128xf32>
    %362 = vector.broadcast %4 : vector<1x128xf32> to vector<8x128xf32>
    %363 = arith.addf %361, %362 : vector<8x128xf32>
    %cst_115 = arith.constant 5.000000e-01 : f32
    %364 = vector.broadcast %cst_115 : f32 to vector<8x128xf32>
    %365 = arith.mulf %364, %363 : vector<8x128xf32>
    %366 = arith.select %12, %363, %365 : vector<8x128xi1>, vector<8x128xf32>
    %367 = math.tanh %366 : vector<8x128xf32>
    %cst_116 = arith.constant 1.000000e+00 : f32
    %368 = vector.broadcast %cst_116 : f32 to vector<8x128xf32>
    %369 = arith.addf %367, %368 : vector<8x128xf32>
    %cst_117 = arith.constant 5.000000e-01 : f32
    %370 = vector.broadcast %cst_117 : f32 to vector<8x128xf32>
    %371 = arith.mulf %370, %369 : vector<8x128xf32>
    %372 = arith.select %12, %367, %371 : vector<8x128xi1>, vector<8x128xf32>
    %373 = vector.extract_strided_slice %372 {offsets = [0, 0], sizes = [8, 32], strides = [1, 1]} : vector<8x128xf32> to vector<8x32xf32>
    %374 = vector.extract_strided_slice %372 {offsets = [0, 32], sizes = [8, 32], strides = [1, 1]} : vector<8x128xf32> to vector<8x32xf32>
    %375 = vector.extract_strided_slice %372 {offsets = [0, 64], sizes = [8, 32], strides = [1, 1]} : vector<8x128xf32> to vector<8x32xf32>
    %376 = vector.extract_strided_slice %372 {offsets = [0, 96], sizes = [8, 32], strides = [1, 1]} : vector<8x128xf32> to vector<8x32xf32>
    %377 = arith.mulf %374, %334 : vector<8x32xf32>
    %378 = arith.mulf %373, %375 : vector<8x32xf32>
    %379 = arith.addf %377, %378 : vector<8x32xf32>
    %380 = math.tanh %379 : vector<8x32xf32>
    %381 = arith.mulf %376, %380 : vector<8x32xf32>
    %c56_118 = arith.constant 56 : index
    %c0_119 = arith.constant 0 : index
    %382 = vector.load %arg11[%c56_118, %c0_119] : memref<72x32xf32, #tpu.memory_space<vmem>>, vector<8x32xf32>
    tpu.vector_store %arg11[%c56_118, %c0_119], %381 {strides = array<i32>} : memref<72x32xf32, #tpu.memory_space<vmem>>, vector<8x32xf32>,
    %c64 = arith.constant 64 : index
    %c0_120 = arith.constant 0 : index
    %383 = vector.load %arg10[%c64, %c0_120] : memref<72x128xf32, #tpu.memory_space<vmem>>, vector<8x128xf32>
    %cst_121 = arith.constant dense<0.000000e+00> : vector<8x128xf32>
    %384 = tpu.matmul %358, %1, %cst_121 {dimension_numbers = #tpu.dot_dimension_numbers<[1], [0], [0], [1], [0, 0, 1, 1], [], []>} : vector<8x32xf32>, vector<32x128xf32>, vector<8x128xf32> -> vector<8x128xf32>
    %385 = arith.addf %383, %384 : vector<8x128xf32>
    %cst_122 = arith.constant 5.000000e-01 : f32
    %386 = vector.broadcast %cst_122 : f32 to vector<8x128xf32>
    %387 = arith.mulf %386, %385 : vector<8x128xf32>
    %388 = arith.select %12, %385, %387 : vector<8x128xi1>, vector<8x128xf32>
    %389 = math.tanh %388 : vector<8x128xf32>
    %cst_123 = arith.constant 1.000000e+00 : f32
    %390 = vector.broadcast %cst_123 : f32 to vector<8x128xf32>
    %391 = arith.addf %389, %390 : vector<8x128xf32>
    %cst_124 = arith.constant 5.000000e-01 : f32
    %392 = vector.broadcast %cst_124 : f32 to vector<8x128xf32>
    %393 = arith.mulf %392, %391 : vector<8x128xf32>
    %394 = arith.select %12, %389, %393 : vector<8x128xi1>, vector<8x128xf32>
    %395 = vector.extract_strided_slice %394 {offsets = [0, 0], sizes = [8, 32], strides = [1, 1]} : vector<8x128xf32> to vector<8x32xf32>
    %396 = vector.extract_strided_slice %394 {offsets = [0, 32], sizes = [8, 32], strides = [1, 1]} : vector<8x128xf32> to vector<8x32xf32>
    %397 = vector.extract_strided_slice %394 {offsets = [0, 64], sizes = [8, 32], strides = [1, 1]} : vector<8x128xf32> to vector<8x32xf32>
    %398 = vector.extract_strided_slice %394 {offsets = [0, 96], sizes = [8, 32], strides = [1, 1]} : vector<8x128xf32> to vector<8x32xf32>
    %399 = arith.mulf %396, %356 : vector<8x32xf32>
    %400 = arith.mulf %395, %397 : vector<8x32xf32>
    %401 = arith.addf %399, %400 : vector<8x32xf32>
    %402 = math.tanh %401 : vector<8x32xf32>
    %403 = arith.mulf %398, %402 : vector<8x32xf32>
    %cst_125 = arith.constant dense<0.000000e+00> : vector<8x128xf32>
    %404 = tpu.matmul %403, %2, %cst_125 {dimension_numbers = #tpu.dot_dimension_numbers<[1], [0], [0], [1], [0, 0, 1, 1], [], []>} : vector<8x32xf32>, vector<32x128xf32>, vector<8x128xf32> -> vector<8x128xf32>
    %cst_126 = arith.constant dense<0.000000e+00> : vector<8x128xf32>
    %405 = tpu.matmul %381, %3, %cst_126 {dimension_numbers = #tpu.dot_dimension_numbers<[1], [0], [0], [1], [0, 0, 1, 1], [], []>} : vector<8x32xf32>, vector<32x128xf32>, vector<8x128xf32> -> vector<8x128xf32>
    %406 = arith.addf %404, %405 : vector<8x128xf32>
    %407 = vector.broadcast %4 : vector<1x128xf32> to vector<8x128xf32>
    %408 = arith.addf %406, %407 : vector<8x128xf32>
    %cst_127 = arith.constant 5.000000e-01 : f32
    %409 = vector.broadcast %cst_127 : f32 to vector<8x128xf32>
    %410 = arith.mulf %409, %408 : vector<8x128xf32>
    %411 = arith.select %12, %408, %410 : vector<8x128xi1>, vector<8x128xf32>
    %412 = math.tanh %411 : vector<8x128xf32>
    %cst_128 = arith.constant 1.000000e+00 : f32
    %413 = vector.broadcast %cst_128 : f32 to vector<8x128xf32>
    %414 = arith.addf %412, %413 : vector<8x128xf32>
    %cst_129 = arith.constant 5.000000e-01 : f32
    %415 = vector.broadcast %cst_129 : f32 to vector<8x128xf32>
    %416 = arith.mulf %415, %414 : vector<8x128xf32>
    %417 = arith.select %12, %412, %416 : vector<8x128xi1>, vector<8x128xf32>
    %418 = vector.extract_strided_slice %417 {offsets = [0, 0], sizes = [8, 32], strides = [1, 1]} : vector<8x128xf32> to vector<8x32xf32>
    %419 = vector.extract_strided_slice %417 {offsets = [0, 32], sizes = [8, 32], strides = [1, 1]} : vector<8x128xf32> to vector<8x32xf32>
    %420 = vector.extract_strided_slice %417 {offsets = [0, 64], sizes = [8, 32], strides = [1, 1]} : vector<8x128xf32> to vector<8x32xf32>
    %421 = vector.extract_strided_slice %417 {offsets = [0, 96], sizes = [8, 32], strides = [1, 1]} : vector<8x128xf32> to vector<8x32xf32>
    %422 = arith.mulf %419, %379 : vector<8x32xf32>
    %423 = arith.mulf %418, %420 : vector<8x32xf32>
    %424 = arith.addf %422, %423 : vector<8x32xf32>
    %425 = math.tanh %424 : vector<8x32xf32>
    %426 = arith.mulf %421, %425 : vector<8x32xf32>
    %c64_130 = arith.constant 64 : index
    %c0_131 = arith.constant 0 : index
    %427 = vector.load %arg11[%c64_130, %c0_131] : memref<72x32xf32, #tpu.memory_space<vmem>>, vector<8x32xf32>
    tpu.vector_store %arg11[%c64_130, %c0_131], %426 {strides = array<i32>} : memref<72x32xf32, #tpu.memory_space<vmem>>, vector<8x32xf32>,
    %c0_132 = arith.constant 0 : index
    %c0_133 = arith.constant 0 : index
    %428 = vector.load %arg11[%c0_132, %c0_133] : memref<72x32xf32, #tpu.memory_space<vmem>>, vector<72x32xf32>
    %cst_134 = arith.constant dense<0.000000e+00> : vector<72x128xf32>
    %429 = tpu.matmul %428, %5, %cst_134 {dimension_numbers = #tpu.dot_dimension_numbers<[1], [0], [0], [1], [0, 0, 1, 1], [], []>} : vector<72x32xf32>, vector<32x128xf32>, vector<72x128xf32> -> vector<72x128xf32>
    %430 = vector.broadcast %6 : vector<1x128xf32> to vector<72x128xf32>
    %431 = arith.addf %429, %430 : vector<72x128xf32>
    %c0_135 = arith.constant 0 : index
    %c0_136 = arith.constant 0 : index
    %432 = vector.load %arg9[%c0_135, %c0_136] : memref<72x128xf32, #tpu.memory_space<vmem>>, vector<72x128xf32>
    tpu.vector_store %arg9[%c0_135, %c0_136], %431 {strides = array<i32>} : memref<72x128xf32, #tpu.memory_space<vmem>>, vector<72x128xf32>,
    return
  }
}

</mosaic_0001>

<llo_original>
// kernel: tpu_custom_call.1
$region0: #{tpu_custom_call.1}
  #allocation0 [shape = 'u32[]', space=smem, size = 0x4, offset = 0x4, fixed_abs, tag = 'smem constant byte address 0x4 - core index']
  #allocation1 [shape = 'u32[72,128]{1,0:T(1,128)}', space=vmem, size = 0x9000, scoped, tag = 'internal scratch']
  #allocation2 [shape = 'f32[72,128]{1,0:T(8,128)}', space=vmem, size = 0x9000, scoped, tag = 'scratch operand']
  #allocation3 [shape = 'f32[72,32]{1,0:T(8,128)}', space=vmem, size = 0x9000, scoped, tag = 'scratch operand']
  %s0 = inlined_call_operand.vmem [shape: f32[72,32], index: 0, kind: input, shape index: {}]
  %s1 = inlined_call_operand.vmem [shape: f32[32,128], index: 1, kind: input, shape index: {}]
  %s2 = inlined_call_operand.vmem [shape: f32[32,128], index: 2, kind: input, shape index: {}]
  %s3 = inlined_call_operand.vmem [shape: f32[1,128], index: 3, kind: input, shape index: {}]
  %s4 = inlined_call_operand.vmem [shape: f32[32,128], index: 4, kind: input, shape index: {}]
  %s5 = inlined_call_operand.hbm [shape: f32[32,128], index: 5, kind: input, shape index: {}]
  %s6 = inlined_call_operand.vmem [shape: f32[1,128], index: 6, kind: input, shape index: {}]
  %s7 = inlined_call_operand.hbm [shape: f32[32,128], index: 7, kind: input, shape index: {}]
  %s8 = inlined_call_operand.vmem [shape: f32[1,128], index: 8, kind: input, shape index: {}]
  %s9 = inlined_call_operand.hbm [shape: f32[72,128], index: 9, kind: output, shape index: {}]
  %s10 = sld [smem:[#allocation0]]
  $region54: #{tpu_custom_call.1} parent=0
    _
  %s12 = ssub.s32 1, %s10
  %s13 = scalar_select 0, %s12, %s10
  $region1: #{tpu_custom_call.1} parent=0
    #allocation4 [shape = 'u8[16384]{0}', space=vmem, size = 0x4000, scoped, tag = 'input window, operand 5, single buffered']
    #allocation5 [shape = 's32[1]{0}', space=sflag, size = 0x4, scoped, tag = 'scoped memory for tpu_custom_call.1']
    #allocation6 [shape = 's32[1]{0}', space=sflag, size = 0x4, scoped, tag = 'scoped memory for tpu_custom_call.1']
    #allocation7 [shape = 'u8[16384]{0}', space=vmem, size = 0x4000, scoped, tag = 'input window, operand 7, single buffered']
    #allocation8 [shape = 's32[1]{0}', space=sflag, size = 0x4, scoped, tag = 'scoped memory for tpu_custom_call.1']
    #allocation9 [shape = 'u8[36864]{0}', space=vmem, size = 0x9000, scoped, tag = 'output window, operand 0, single buffered']
    %14 = vsyncpa [#allocation5], 0
    %15 = vsyncpa [#allocation8], 0
    %16 = vsyncpa [#allocation6], 0
    // Predicated region
    $region2: #{tpu_custom_call.1} parent=1 // pred_check
      _
    $region3: #{tpu_custom_call.1} parent=1 // pred_check_branch
      %18 = sbr.rel (0) target = $region5
    $region4: #{tpu_custom_call.1} parent=1 // pred_region
      _
    $region5: #{tpu_custom_call.1} parent=1 // pred_fallthru
      _
    // Predicated region
    $region6: #{tpu_custom_call.1} parent=1 // pred_check
      _
    $region7: #{tpu_custom_call.1} parent=1 // pred_check_branch
      %20 = sbr.rel (0) target = $region9
    $region8: #{tpu_custom_call.1} parent=1 // pred_region
      _
    $region9: #{tpu_custom_call.1} parent=1 // pred_fallthru
      _
    // Predicated region
    $region10: #{tpu_custom_call.1} parent=1 // pred_check
      _
    $region11: #{tpu_custom_call.1} parent=1 // pred_check_branch
      %22 = sbr.rel (0) target = $region13
    $region12: #{tpu_custom_call.1} parent=1 // pred_region
      _
    $region13: #{tpu_custom_call.1} parent=1 // pred_fallthru
      _
    // Predicated region
    $region14: #{tpu_custom_call.1} parent=1 // pred_check
      _
    $region15: #{tpu_custom_call.1} parent=1 // pred_check_branch
      %24 = sbr.rel (0) target = $region17
    $region16: #{tpu_custom_call.1} parent=1 // pred_region
      _
    $region17: #{tpu_custom_call.1} parent=1 // pred_fallthru
      _
    // Predicated region
    $region18: #{tpu_custom_call.1} parent=1 // pred_check
      _
    $region19: #{tpu_custom_call.1} parent=1 // pred_check_branch
      %26 = sbr.rel (0) target = $region21
    $region20: #{tpu_custom_call.1} parent=1 // pred_region
      _
    $region21: #{tpu_custom_call.1} parent=1 // pred_fallthru
      _
    // Predicated region
    $region22: #{tpu_custom_call.1} parent=1 // pred_check
      _
    $region23: #{tpu_custom_call.1} parent=1 // pred_check_branch
      %28 = sbr.rel (0) target = $region25
    $region24: #{tpu_custom_call.1} parent=1 // pred_region
      %30 = vsyncadd [#allocation5], 0
      %s31 = sshll.u32 %s5, 4
      %s32 = int_to_ptr.hbm [resolvable:$true] %s31
      %s33 = sshll.u32 [#allocation4], 4
      %s34 = int_to_ptr.vmem [resolvable:$true] %s33
      %39 = dma.hbm_to_vmem [thread:$0]  %s32, 512, %s34, [#allocation5], 128, 128, 8
    $region25: #{tpu_custom_call.1} parent=1 // pred_fallthru
      _
    // Predicated region
    $region26: #{tpu_custom_call.1} parent=1 // pred_check
      _
    $region27: #{tpu_custom_call.1} parent=1 // pred_check_branch
      %41 = sbr.rel (0) target = $region29
    $region28: #{tpu_custom_call.1} parent=1 // pred_region
      _
    $region29: #{tpu_custom_call.1} parent=1 // pred_fallthru
      _
    // Predicated region
    $region30: #{tpu_custom_call.1} parent=1 // pred_check
      _
    $region31: #{tpu_custom_call.1} parent=1 // pred_check_branch
      %43 = sbr.rel (0) target = $region33
    $region32: #{tpu_custom_call.1} parent=1 // pred_region
      %45 = vsyncadd [#allocation8], 0
      %s46 = sshll.u32 %s7, 4
      %s47 = int_to_ptr.hbm [resolvable:$true] %s46
      %s48 = sshll.u32 [#allocation7], 4
      %s49 = int_to_ptr.vmem [resolvable:$true] %s48
      %54 = dma.hbm_to_vmem [thread:$0]  %s47, 512, %s49, [#allocation8], 128, 128, 8
    $region33: #{tpu_custom_call.1} parent=1 // pred_fallthru
      _
    // Predicated region
    $region34: #{tpu_custom_call.1} parent=1 // pred_check
      _
    $region35: #{tpu_custom_call.1} parent=1 // pred_check_branch
      %56 = sbr.rel (0) target = $region37
    $region36: #{tpu_custom_call.1} parent=1 // pred_region
      _
    $region37: #{tpu_custom_call.1} parent=1 // pred_fallthru
      _
    // Predicated region
    $region38: #{tpu_custom_call.1} parent=1 // pred_check
      _
    $region39: #{tpu_custom_call.1} parent=1 // pred_check_branch
      %58 = sbr.rel (0) target = $region41
    $region40: #{tpu_custom_call.1} parent=1 // pred_region
      %60 = dma.done [#allocation5], 512
    $region41: #{tpu_custom_call.1} parent=1 // pred_fallthru
      _
    // Predicated region
    $region42: #{tpu_custom_call.1} parent=1 // pred_check
      _
    $region43: #{tpu_custom_call.1} parent=1 // pred_check_branch
      %62 = sbr.rel (0) target = $region45
    $region44: #{tpu_custom_call.1} parent=1 // pred_region
      %64 = dma.done [#allocation8], 512
    $region45: #{tpu_custom_call.1} parent=1 // pred_fallthru
      _
    %v65 = vld [vmem:[%s1] sm:$0xff]
    %v66 = vld [vmem:[%s1 + $0x8] sm:$0xff]
    %v67 = vld [vmem:[%s1 + $0x10] sm:$0xff]
    %v68 = vld [vmem:[%s1 + $0x18] sm:$0xff]
    %v69 = vld [vmem:[%s2] sm:$0xff]
    %v70 = vld [vmem:[%s2 + $0x8] sm:$0xff]
    %v71 = vld [vmem:[%s2 + $0x10] sm:$0xff]
    %v72 = vld [vmem:[%s2 + $0x18] sm:$0xff]
    %v73 = vld [vmem:[%s4] sm:$0xff]
    %v74 = vld [vmem:[%s4 + $0x8] sm:$0xff]
    %v75 = vld [vmem:[%s4 + $0x10] sm:$0xff]
    %v76 = vld [vmem:[%s4 + $0x18] sm:$0xff]
    %v77 = vld [vmem:[#allocation4] sm:$0xff]
    %v78 = vld [vmem:[#allocation4 + $0x8] sm:$0xff]
    %v79 = vld [vmem:[#allocation4 + $0x10] sm:$0xff]
    %v80 = vld [vmem:[#allocation4 + $0x18] sm:$0xff]
    %v81 = vld [vmem:[%s6] sm:$0x1]
    %v82 = vld [vmem:[#allocation7] sm:$0xff]
    %v83 = vld [vmem:[#allocation7 + $0x8] sm:$0xff]
    %v84 = vld [vmem:[#allocation7 + $0x10] sm:$0xff]
    %v85 = vld [vmem:[#allocation7 + $0x18] sm:$0xff]
    %v86 = vld [vmem:[%s8] sm:$0x1]
    %v87 = vlaneseq
    %v88 = vand.u32 %v87, 127
    %vm89 = vcmp.ge.s32.totalorder %v88, 64
    %vm90 = vcmp.lt.s32.totalorder %v88, 96
    %vm91 = vmand %vm89, %vm90
    %v92 = vld [vmem:[%s0] sm:$0xff]
    %v93 = vld [vmem:[%s0 + $0x8] sm:$0xff]
    %v94 = vld [vmem:[%s0 + $0x10] sm:$0xff]
    %v95 = vld [vmem:[%s0 + $0x18] sm:$0xff]
    %v96 = vld [vmem:[%s0 + $0x20] sm:$0xff]
    %v97 = vld [vmem:[%s0 + $0x28] sm:$0xff]
    %v98 = vld [vmem:[%s0 + $0x30] sm:$0xff]
    %v99 = vld [vmem:[%s0 + $0x38] sm:$0xff]
    %v100 = vld [vmem:[%s0 + $0x40] sm:$0xff]
    %v101 = vld [vmem:[%s3] sm:$0x1]
    %v103 = vperm.slane %v101, 0
    %vm105 = vcmask 261120
    %v107 = vsel %vm105, %v92, 0
    %v110 = vsel %vm105, %v93, 0
    %v113 = vsel %vm105, %v94, 0
    %v116 = vsel %vm105, %v95, 0
    %v119 = vsel %vm105, %v96, 0
    %v122 = vsel %vm105, %v97, 0
    %v125 = vsel %vm105, %v98, 0
    %v128 = vsel %vm105, %v99, 0
    %v131 = vsel %vm105, %v100, 0
    %133 = vmatpush.msra.mxu0 0.0
    %134 = vmatpush.msra.mxu0 0.0
    %135 = vmatpush.msra.mxu0 0.0
    %136 = vmatpush.msra.mxu0 0.0
    %137 = vmatpush.msra.mxu0 0.0
    %138 = vmatpush.msra.mxu0 0.0
    %139 = vmatpush.msra.mxu0 0.0
    %140 = vmatpush.msra.mxu0 0.0
    %141 = vmatpush.msra.mxu0 0.0
    %142 = vmatpush.msra.mxu0 0.0
    %143 = vmatpush.msra.mxu0 0.0
    %144 = vmatpush.msra.mxu0 0.0
    %145 = vmatpush.msra.mxu0 %v68
    %146 = vmatpush.msra.mxu0 %v67
    %147 = vmatpush.msra.mxu0 %v66
    %148 = vmatpush.msra.mxu0 %v65
    %149 = vmatmul.f32.gmra.mxu0 %v107
    %v150 = vpop.f32.mrf.mxu0
    %v151 = vadd.f32 %v103, %v150
    %152 = vmatmul.f32.gmra.mxu0 %v110
    %v153 = vpop.f32.mrf.mxu0
    %v154 = vadd.f32 %v103, %v153
    %155 = vmatmul.f32.gmra.mxu0 %v113
    %v156 = vpop.f32.mrf.mxu0
    %v157 = vadd.f32 %v103, %v156
    %158 = vmatmul.f32.gmra.mxu0 %v116
    %v159 = vpop.f32.mrf.mxu0
    %v160 = vadd.f32 %v103, %v159
    %161 = vmatmul.f32.gmra.mxu0 %v119
    %v162 = vpop.f32.mrf.mxu0
    %v163 = vadd.f32 %v103, %v162
    %164 = vmatmul.f32.gmra.mxu0 %v122
    %v165 = vpop.f32.mrf.mxu0
    %v166 = vadd.f32 %v103, %v165
    %167 = vmatmul.f32.gmra.mxu0 %v125
    %v168 = vpop.f32.mrf.mxu0
    %v169 = vadd.f32 %v103, %v168
    %170 = vmatmul.f32.gmra.mxu0 %v128
    %v171 = vpop.f32.mrf.mxu0
    %v172 = vadd.f32 %v103, %v171
    %173 = vmatmul.f32.gmra.mxu0 %v131
    %v174 = vpop.f32.mrf.mxu0
    %v175 = vadd.f32 %v103, %v174
    %176 = vdwg.mxu0
    %177 = vst [vmem:[#allocation2] sm:$0xff] %v151
    %178 = vst [vmem:[#allocation2 + $0x8] sm:$0xff] %v154
    %179 = vst [vmem:[#allocation2 + $0x10] sm:$0xff] %v157
    %180 = vst [vmem:[#allocation2 + $0x18] sm:$0xff] %v160
    %181 = vst [vmem:[#allocation2 + $0x20] sm:$0xff] %v163
    %182 = vst [vmem:[#allocation2 + $0x28] sm:$0xff] %v166
    %183 = vst [vmem:[#allocation2 + $0x30] sm:$0xff] %v169
    %184 = vst [vmem:[#allocation2 + $0x38] sm:$0xff] %v172
    %185 = vst [vmem:[#allocation2 + $0x40] sm:$0xff] %v175
    %v186 = vld [vmem:[#allocation2] sm:$0xff]
    %v188 = vsel %vm105, 0.0, 0
    %190 = vmatpush.msra.mxu0 0.0
    %191 = vmatpush.msra.mxu0 0.0
    %192 = vmatpush.msra.mxu0 0.0
    %193 = vmatpush.msra.mxu0 0.0
    %194 = vmatpush.msra.mxu0 0.0
    %195 = vmatpush.msra.mxu0 0.0
    %196 = vmatpush.msra.mxu0 0.0
    %197 = vmatpush.msra.mxu0 0.0
    %198 = vmatpush.msra.mxu0 0.0
    %199 = vmatpush.msra.mxu0 0.0
    %200 = vmatpush.msra.mxu0 0.0
    %201 = vmatpush.msra.mxu0 0.0
    %202 = vmatpush.msra.mxu0 %v72
    %203 = vmatpush.msra.mxu0 %v71
    %204 = vmatpush.msra.mxu0 %v70
    %205 = vmatpush.msra.mxu0 %v69
    %206 = vmatmul.f32.gmra.mxu0 %v188
    %v207 = vpop.f32.mrf.mxu0
    %v208 = vadd.f32 0.0, %v207
    %209 = vdwg.mxu0
    %v210 = vadd.f32 %v186, %v208
    %v211 = vmul.f32 %v210, 0.5
    %v212 = vsel %vm91, %v210, %v211
    %v213 = vtanh.pop %v212
    %v214 = vadd.f32 %v213, 1.0
    %v215 = vmul.f32 %v214, 0.5
    %v216 = vsel %vm91, %v213, %v215
    %v217 = vmul.f32 %v216, 0.0
    %219 = vrot.lane.b32.xlu0 %v216, 64
    %v220 = vpop.permute.xlu0 %219
    %v222 = vmul.f32 %v216, %v220
    %224 = vrot.lane.b32.xlu0 %v222, 32
    %v225 = vpop.permute.xlu0 %224
    %v227 = vadd.f32 %v217, %v225
    %v228 = vtanh.pop %v227
    %230 = vrot.lane.b32.xlu0 %v228, 64
    %v231 = vpop.permute.xlu0 %230
    %v233 = vmul.f32 %v216, %v231
    %234 = vmatpush.msra.mxu0 0.0
    %235 = vmatpush.msra.mxu0 0.0
    %236 = vmatpush.msra.mxu0 0.0
    %237 = vmatpush.msra.mxu0 0.0
    %238 = vmatpush.msra.mxu0 0.0
    %239 = vmatpush.msra.mxu0 0.0
    %240 = vmatpush.msra.mxu0 0.0
    %241 = vmatpush.msra.mxu0 0.0
    %242 = vmatpush.msra.mxu0 0.0
    %243 = vmatpush.msra.mxu0 0.0
    %244 = vmatpush.msra.mxu0 0.0
    %245 = vmatpush.msra.mxu0 0.0
    %246 = vmatpush.msra.mxu0 %v80
    %247 = vmatpush.msra.mxu0 %v79
    %248 = vmatpush.msra.mxu0 %v78
    %249 = vmatpush.msra.mxu0 %v77
    %250 = vmatmul.f32.gmra.mxu0 %v188
    %v251 = vpop.f32.mrf.mxu0
    %v252 = vadd.f32 0.0, %v251
    %253 = vdwg.mxu0
    %255 = vrot.lane.b32.xlu0 %v233, 32
    %v256 = vpop.permute.xlu0 %255
    %v257 = vsel %vm105, %v256, 0
    %259 = vmatpush.msra.mxu0 0.0
    %260 = vmatpush.msra.mxu0 0.0
    %261 = vmatpush.msra.mxu0 0.0
    %262 = vmatpush.msra.mxu0 0.0
    %263 = vmatpush.msra.mxu0 0.0
    %264 = vmatpush.msra.mxu0 0.0
    %265 = vmatpush.msra.mxu0 0.0
    %266 = vmatpush.msra.mxu0 0.0
    %267 = vmatpush.msra.mxu0 0.0
    %268 = vmatpush.msra.mxu0 0.0
    %269 = vmatpush.msra.mxu0 0.0
    %270 = vmatpush.msra.mxu0 0.0
    %271 = vmatpush.msra.mxu0 %v76
    %272 = vmatpush.msra.mxu0 %v75
    %273 = vmatpush.msra.mxu0 %v74
    %274 = vmatpush.msra.mxu0 %v73
    %275 = vmatmul.f32.gmra.mxu0 %v257
    %v276 = vpop.f32.mrf.mxu0
    %v277 = vadd.f32 %v252, %v276
    %278 = vdwg.mxu0
    %v280 = vperm.slane %v81, 0
    %v282 = vadd.f32 %v277, %v280
    %v283 = vmul.f32 %v282, 0.5
    %v284 = vsel %vm91, %v282, %v283
    %v285 = vtanh.pop %v284
    %v286 = vadd.f32 %v285, 1.0
    %v287 = vmul.f32 %v286, 0.5
    %v288 = vsel %vm91, %v285, %v287
    %v289 = vmul.f32 %v288, 0.0
    %291 = vrot.lane.b32.xlu0 %v288, 64
    %v292 = vpop.permute.xlu0 %291
    %v294 = vmul.f32 %v288, %v292
    %296 = vrot.lane.b32.xlu0 %v294, 32
    %v297 = vpop.permute.xlu0 %296
    %v299 = vadd.f32 %v289, %v297
    %v300 = vtanh.pop %v299
    %302 = vrot.lane.b32.xlu0 %v300, 64
    %v303 = vpop.permute.xlu0 %302
    %v305 = vmul.f32 %v288, %v303
    %307 = vrot.lane.b32.xlu0 %v305, 32
    %v308 = vpop.permute.xlu0 %307
    %310 = vst.msk [vmem:[#allocation3] sm:$0xff] %vm105, %v308
    %v311 = vld [vmem:[#allocation2 + $0x8] sm:$0xff]
    %312 = vmatpush.msra.mxu0 0.0
    %313 = vmatpush.msra.mxu0 0.0
    %314 = vmatpush.msra.mxu0 0.0
    %315 = vmatpush.msra.mxu0 0.0
    %316 = vmatpush.msra.mxu0 0.0
    %317 = vmatpush.msra.mxu0 0.0
    %318 = vmatpush.msra.mxu0 0.0
    %319 = vmatpush.msra.mxu0 0.0
    %320 = vmatpush.msra.mxu0 0.0
    %321 = vmatpush.msra.mxu0 0.0
    %322 = vmatpush.msra.mxu0 0.0
    %323 = vmatpush.msra.mxu0 0.0
    %324 = vmatpush.msra.mxu0 %v72
    %325 = vmatpush.msra.mxu0 %v71
    %326 = vmatpush.msra.mxu0 %v70
    %327 = vmatpush.msra.mxu0 %v69
    %328 = vmatmul.f32.gmra.mxu0 %v257
    %v329 = vpop.f32.mrf.mxu0
    %v330 = vadd.f32 0.0, %v329
    %331 = vdwg.mxu0
    %v332 = vadd.f32 %v311, %v330
    %v333 = vmul.f32 %v332, 0.5
    %v334 = vsel %vm91, %v332, %v333
    %v335 = vtanh.pop %v334
    %v336 = vadd.f32 %v335, 1.0
    %v337 = vmul.f32 %v336, 0.5
    %v338 = vsel %vm91, %v335, %v337
    %v339 = vmul.f32 %v338, %v227
    %341 = vrot.lane.b32.xlu0 %v338, 64
    %v342 = vpop.permute.xlu0 %341
    %v344 = vmul.f32 %v338, %v342
    %346 = vrot.lane.b32.xlu0 %v344, 32
    %v347 = vpop.permute.xlu0 %346
    %v349 = vadd.f32 %v339, %v347
    %v350 = vtanh.pop %v349
    %352 = vrot.lane.b32.xlu0 %v350, 64
    %v353 = vpop.permute.xlu0 %352
    %v355 = vmul.f32 %v338, %v353
    %v356 = vsel %vm105, %v308, 0
    %358 = vmatpush.msra.mxu0 0.0
    %359 = vmatpush.msra.mxu0 0.0
    %360 = vmatpush.msra.mxu0 0.0
    %361 = vmatpush.msra.mxu0 0.0
    %362 = vmatpush.msra.mxu0 0.0
    %363 = vmatpush.msra.mxu0 0.0
    %364 = vmatpush.msra.mxu0 0.0
    %365 = vmatpush.msra.mxu0 0.0
    %366 = vmatpush.msra.mxu0 0.0
    %367 = vmatpush.msra.mxu0 0.0
    %368 = vmatpush.msra.mxu0 0.0
    %369 = vmatpush.msra.mxu0 0.0
    %370 = vmatpush.msra.mxu0 %v80
    %371 = vmatpush.msra.mxu0 %v79
    %372 = vmatpush.msra.mxu0 %v78
    %373 = vmatpush.msra.mxu0 %v77
    %374 = vmatmul.f32.gmra.mxu0 %v356
    %v375 = vpop.f32.mrf.mxu0
    %v376 = vadd.f32 0.0, %v375
    %377 = vdwg.mxu0
    %379 = vrot.lane.b32.xlu0 %v355, 32
    %v380 = vpop.permute.xlu0 %379
    %v381 = vsel %vm105, %v380, 0
    %383 = vmatpush.msra.mxu0 0.0
    %384 = vmatpush.msra.mxu0 0.0
    %385 = vmatpush.msra.mxu0 0.0
    %386 = vmatpush.msra.mxu0 0.0
    %387 = vmatpush.msra.mxu0 0.0
    %388 = vmatpush.msra.mxu0 0.0
    %389 = vmatpush.msra.mxu0 0.0
    %390 = vmatpush.msra.mxu0 0.0
    %391 = vmatpush.msra.mxu0 0.0
    %392 = vmatpush.msra.mxu0 0.0
    %393 = vmatpush.msra.mxu0 0.0
    %394 = vmatpush.msra.mxu0 0.0
    %395 = vmatpush.msra.mxu0 %v76
    %396 = vmatpush.msra.mxu0 %v75
    %397 = vmatpush.msra.mxu0 %v74
    %398 = vmatpush.msra.mxu0 %v73
    %399 = vmatmul.f32.gmra.mxu0 %v381
    %v400 = vpop.f32.mrf.mxu0
    %v401 = vadd.f32 %v376, %v400
    %402 = vdwg.mxu0
    %v403 = vadd.f32 %v401, %v280
    %v404 = vmul.f32 %v403, 0.5
    %v405 = vsel %vm91, %v403, %v404
    %v406 = vtanh.pop %v405
    %v407 = vadd.f32 %v406, 1.0
    %v408 = vmul.f32 %v407, 0.5
    %v409 = vsel %vm91, %v406, %v408
    %v410 = vmul.f32 %v409, %v299
    %412 = vrot.lane.b32.xlu0 %v409, 64
    %v413 = vpop.permute.xlu0 %412
    %v415 = vmul.f32 %v409, %v413
    %417 = vrot.lane.b32.xlu0 %v415, 32
    %v418 = vpop.permute.xlu0 %417
    %v420 = vadd.f32 %v410, %v418
    %v421 = vtanh.pop %v420
    %423 = vrot.lane.b32.xlu0 %v421, 64
    %v424 = vpop.permute.xlu0 %423
    %v426 = vmul.f32 %v409, %v424
    %428 = vrot.lane.b32.xlu0 %v426, 32
    %v429 = vpop.permute.xlu0 %428
    %431 = vst.msk [vmem:[#allocation3 + $0x8] sm:$0xff] %vm105, %v429
    %v432 = vld [vmem:[#allocation2 + $0x10] sm:$0xff]
    %433 = vmatpush.msra.mxu0 0.0
    %434 = vmatpush.msra.mxu0 0.0
    %435 = vmatpush.msra.mxu0 0.0
    %436 = vmatpush.msra.mxu0 0.0
    %437 = vmatpush.msra.mxu0 0.0
    %438 = vmatpush.msra.mxu0 0.0
    %439 = vmatpush.msra.mxu0 0.0
    %440 = vmatpush.msra.mxu0 0.0
    %441 = vmatpush.msra.mxu0 0.0
    %442 = vmatpush.msra.mxu0 0.0
    %443 = vmatpush.msra.mxu0 0.0
    %444 = vmatpush.msra.mxu0 0.0
    %445 = vmatpush.msra.mxu0 %v72
    %446 = vmatpush.msra.mxu0 %v71
    %447 = vmatpush.msra.mxu0 %v70
    %448 = vmatpush.msra.mxu0 %v69
    %449 = vmatmul.f32.gmra.mxu0 %v381
    %v450 = vpop.f32.mrf.mxu0
    %v451 = vadd.f32 0.0, %v450
    %452 = vdwg.mxu0
    %v453 = vadd.f32 %v432, %v451
    %v454 = vmul.f32 %v453, 0.5
    %v455 = vsel %vm91, %v453, %v454
    %v456 = vtanh.pop %v455
    %v457 = vadd.f32 %v456, 1.0
    %v458 = vmul.f32 %v457, 0.5
    %v459 = vsel %vm91, %v456, %v458
    %v460 = vmul.f32 %v459, %v349
    %462 = vrot.lane.b32.xlu0 %v459, 64
    %v463 = vpop.permute.xlu0 %462
    %v465 = vmul.f32 %v459, %v463
    %467 = vrot.lane.b32.xlu0 %v465, 32
    %v468 = vpop.permute.xlu0 %467
    %v470 = vadd.f32 %v460, %v468
    %v471 = vtanh.pop %v470
    %473 = vrot.lane.b32.xlu0 %v471, 64
    %v474 = vpop.permute.xlu0 %473
    %v476 = vmul.f32 %v459, %v474
    %v477 = vsel %vm105, %v429, 0
    %479 = vmatpush.msra.mxu0 0.0
    %480 = vmatpush.msra.mxu0 0.0
    %481 = vmatpush.msra.mxu0 0.0
    %482 = vmatpush.msra.mxu0 0.0
    %483 = vmatpush.msra.mxu0 0.0
    %484 = vmatpush.msra.mxu0 0.0
    %485 = vmatpush.msra.mxu0 0.0
    %486 = vmatpush.msra.mxu0 0.0
    %487 = vmatpush.msra.mxu0 0.0
    %488 = vmatpush.msra.mxu0 0.0
    %489 = vmatpush.msra.mxu0 0.0
    %490 = vmatpush.msra.mxu0 0.0
    %491 = vmatpush.msra.mxu0 %v80
    %492 = vmatpush.msra.mxu0 %v79
    %493 = vmatpush.msra.mxu0 %v78
    %494 = vmatpush.msra.mxu0 %v77
    %495 = vmatmul.f32.gmra.mxu0 %v477
    %v496 = vpop.f32.mrf.mxu0
    %v497 = vadd.f32 0.0, %v496
    %498 = vdwg.mxu0
    %500 = vrot.lane.b32.xlu0 %v476, 32
    %v501 = vpop.permute.xlu0 %500
    %v502 = vsel %vm105, %v501, 0
    %504 = vmatpush.msra.mxu0 0.0
    %505 = vmatpush.msra.mxu0 0.0
    %506 = vmatpush.msra.mxu0 0.0
    %507 = vmatpush.msra.mxu0 0.0
    %508 = vmatpush.msra.mxu0 0.0
    %509 = vmatpush.msra.mxu0 0.0
    %510 = vmatpush.msra.mxu0 0.0
    %511 = vmatpush.msra.mxu0 0.0
    %512 = vmatpush.msra.mxu0 0.0
    %513 = vmatpush.msra.mxu0 0.0
    %514 = vmatpush.msra.mxu0 0.0
    %515 = vmatpush.msra.mxu0 0.0
    %516 = vmatpush.msra.mxu0 %v76
    %517 = vmatpush.msra.mxu0 %v75
    %518 = vmatpush.msra.mxu0 %v74
    %519 = vmatpush.msra.mxu0 %v73
    %520 = vmatmul.f32.gmra.mxu0 %v502
    %v521 = vpop.f32.mrf.mxu0
    %v522 = vadd.f32 %v497, %v521
    %523 = vdwg.mxu0
    %v524 = vadd.f32 %v522, %v280
    %v525 = vmul.f32 %v524, 0.5
    %v526 = vsel %vm91, %v524, %v525
    %v527 = vtanh.pop %v526
    %v528 = vadd.f32 %v527, 1.0
    %v529 = vmul.f32 %v528, 0.5
    %v530 = vsel %vm91, %v527, %v529
    %v531 = vmul.f32 %v530, %v420
    %533 = vrot.lane.b32.xlu0 %v530, 64
    %v534 = vpop.permute.xlu0 %533
    %v536 = vmul.f32 %v530, %v534
    %538 = vrot.lane.b32.xlu0 %v536, 32
    %v539 = vpop.permute.xlu0 %538
    %v541 = vadd.f32 %v531, %v539
    %v542 = vtanh.pop %v541
    %544 = vrot.lane.b32.xlu0 %v542, 64
    %v545 = vpop.permute.xlu0 %544
    %v547 = vmul.f32 %v530, %v545
    %549 = vrot.lane.b32.xlu0 %v547, 32
    %v550 = vpop.permute.xlu0 %549
    %552 = vst.msk [vmem:[#allocation3 + $0x10] sm:$0xff] %vm105, %v550
    %v553 = vld [vmem:[#allocation2 + $0x18] sm:$0xff]
    %554 = vmatpush.msra.mxu0 0.0
    %555 = vmatpush.msra.mxu0 0.0
    %556 = vmatpush.msra.mxu0 0.0
    %557 = vmatpush.msra.mxu0 0.0
    %558 = vmatpush.msra.mxu0 0.0
    %559 = vmatpush.msra.mxu0 0.0
    %560 = vmatpush.msra.mxu0 0.0
    %561 = vmatpush.msra.mxu0 0.0
    %562 = vmatpush.msra.mxu0 0.0
    %563 = vmatpush.msra.mxu0 0.0
    %564 = vmatpush.msra.mxu0 0.0
    %565 = vmatpush.msra.mxu0 0.0
    %566 = vmatpush.msra.mxu0 %v72
    %567 = vmatpush.msra.mxu0 %v71
    %568 = vmatpush.msra.mxu0 %v70
    %569 = vmatpush.msra.mxu0 %v69
    %570 = vmatmul.f32.gmra.mxu0 %v502
    %v571 = vpop.f32.mrf.mxu0
    %v572 = vadd.f32 0.0, %v571
    %573 = vdwg.mxu0
    %v574 = vadd.f32 %v553, %v572
    %v575 = vmul.f32 %v574, 0.5
    %v576 = vsel %vm91, %v574, %v575
    %v577 = vtanh.pop %v576
    %v578 = vadd.f32 %v577, 1.0
    %v579 = vmul.f32 %v578, 0.5
    %v580 = vsel %vm91, %v577, %v579
    %v581 = vmul.f32 %v580, %v470
    %583 = vrot.lane.b32.xlu0 %v580, 64
    %v584 = vpop.permute.xlu0 %583
    %v586 = vmul.f32 %v580, %v584
    %588 = vrot.lane.b32.xlu0 %v586, 32
    %v589 = vpop.permute.xlu0 %588
    %v591 = vadd.f32 %v581, %v589
    %v592 = vtanh.pop %v591
    %594 = vrot.lane.b32.xlu0 %v592, 64
    %v595 = vpop.permute.xlu0 %594
    %v597 = vmul.f32 %v580, %v595
    %v598 = vsel %vm105, %v550, 0
    %600 = vmatpush.msra.mxu0 0.0
    %601 = vmatpush.msra.mxu0 0.0
    %602 = vmatpush.msra.mxu0 0.0
    %603 = vmatpush.msra.mxu0 0.0
    %604 = vmatpush.msra.mxu0 0.0
    %605 = vmatpush.msra.mxu0 0.0
    %606 = vmatpush.msra.mxu0 0.0
    %607 = vmatpush.msra.mxu0 0.0
    %608 = vmatpush.msra.mxu0 0.0
    %609 = vmatpush.msra.mxu0 0.0
    %610 = vmatpush.msra.mxu0 0.0
    %611 = vmatpush.msra.mxu0 0.0
    %612 = vmatpush.msra.mxu0 %v80
    %613 = vmatpush.msra.mxu0 %v79
    %614 = vmatpush.msra.mxu0 %v78
    %615 = vmatpush.msra.mxu0 %v77
    %616 = vmatmul.f32.gmra.mxu0 %v598
    %v617 = vpop.f32.mrf.mxu0
    %v618 = vadd.f32 0.0, %v617
    %619 = vdwg.mxu0
    %621 = vrot.lane.b32.xlu0 %v597, 32
    %v622 = vpop.permute.xlu0 %621
    %v623 = vsel %vm105, %v622, 0
    %625 = vmatpush.msra.mxu0 0.0
    %626 = vmatpush.msra.mxu0 0.0
    %627 = vmatpush.msra.mxu0 0.0
    %628 = vmatpush.msra.mxu0 0.0
    %629 = vmatpush.msra.mxu0 0.0
    %630 = vmatpush.msra.mxu0 0.0
    %631 = vmatpush.msra.mxu0 0.0
    %632 = vmatpush.msra.mxu0 0.0
    %633 = vmatpush.msra.mxu0 0.0
    %634 = vmatpush.msra.mxu0 0.0
    %635 = vmatpush.msra.mxu0 0.0
    %636 = vmatpush.msra.mxu0 0.0
    %637 = vmatpush.msra.mxu0 %v76
    %638 = vmatpush.msra.mxu0 %v75
    %639 = vmatpush.msra.mxu0 %v74
    %640 = vmatpush.msra.mxu0 %v73
    %641 = vmatmul.f32.gmra.mxu0 %v623
    %v642 = vpop.f32.mrf.mxu0
    %v643 = vadd.f32 %v618, %v642
    %644 = vdwg.mxu0
    %v645 = vadd.f32 %v643, %v280
    %v646 = vmul.f32 %v645, 0.5
    %v647 = vsel %vm91, %v645, %v646
    %v648 = vtanh.pop %v647
    %v649 = vadd.f32 %v648, 1.0
    %v650 = vmul.f32 %v649, 0.5
    %v651 = vsel %vm91, %v648, %v650
    %v652 = vmul.f32 %v651, %v541
    %654 = vrot.lane.b32.xlu0 %v651, 64
    %v655 = vpop.permute.xlu0 %654
    %v657 = vmul.f32 %v651, %v655
    %659 = vrot.lane.b32.xlu0 %v657, 32
    %v660 = vpop.permute.xlu0 %659
    %v662 = vadd.f32 %v652, %v660
    %v663 = vtanh.pop %v662
    %665 = vrot.lane.b32.xlu0 %v663, 64
    %v666 = vpop.permute.xlu0 %665
    %v668 = vmul.f32 %v651, %v666
    %670 = vrot.lane.b32.xlu0 %v668, 32
    %v671 = vpop.permute.xlu0 %670
    %673 = vst.msk [vmem:[#allocation3 + $0x18] sm:$0xff] %vm105, %v671
    %v674 = vld [vmem:[#allocation2 + $0x20] sm:$0xff]
    %675 = vmatpush.msra.mxu0 0.0
    %676 = vmatpush.msra.mxu0 0.0
    %677 = vmatpush.msra.mxu0 0.0
    %678 = vmatpush.msra.mxu0 0.0
    %679 = vmatpush.msra.mxu0 0.0
    %680 = vmatpush.msra.mxu0 0.0
    %681 = vmatpush.msra.mxu0 0.0
    %682 = vmatpush.msra.mxu0 0.0
    %683 = vmatpush.msra.mxu0 0.0
    %684 = vmatpush.msra.mxu0 0.0
    %685 = vmatpush.msra.mxu0 0.0
    %686 = vmatpush.msra.mxu0 0.0
    %687 = vmatpush.msra.mxu0 %v72
    %688 = vmatpush.msra.mxu0 %v71
    %689 = vmatpush.msra.mxu0 %v70
    %690 = vmatpush.msra.mxu0 %v69
    %691 = vmatmul.f32.gmra.mxu0 %v623
    %v692 = vpop.f32.mrf.mxu0
    %v693 = vadd.f32 0.0, %v692
    %694 = vdwg.mxu0
    %v695 = vadd.f32 %v674, %v693
    %v696 = vmul.f32 %v695, 0.5
    %v697 = vsel %vm91, %v695, %v696
    %v698 = vtanh.pop %v697
    %v699 = vadd.f32 %v698, 1.0
    %v700 = vmul.f32 %v699, 0.5
    %v701 = vsel %vm91, %v698, %v700
    %v702 = vmul.f32 %v701, %v591
    %704 = vrot.lane.b32.xlu0 %v701, 64
    %v705 = vpop.permute.xlu0 %704
    %v707 = vmul.f32 %v701, %v705
    %709 = vrot.lane.b32.xlu0 %v707, 32
    %v710 = vpop.permute.xlu0 %709
    %v712 = vadd.f32 %v702, %v710
    %v713 = vtanh.pop %v712
    %715 = vrot.lane.b32.xlu0 %v713, 64
    %v716 = vpop.permute.xlu0 %715
    %v718 = vmul.f32 %v701, %v716
    %v719 = vsel %vm105, %v671, 0
    %721 = vmatpush.msra.mxu0 0.0
    %722 = vmatpush.msra.mxu0 0.0
    %723 = vmatpush.msra.mxu0 0.0
    %724 = vmatpush.msra.mxu0 0.0
    %725 = vmatpush.msra.mxu0 0.0
    %726 = vmatpush.msra.mxu0 0.0
    %727 = vmatpush.msra.mxu0 0.0
    %728 = vmatpush.msra.mxu0 0.0
    %729 = vmatpush.msra.mxu0 0.0
    %730 = vmatpush.msra.mxu0 0.0
    %731 = vmatpush.msra.mxu0 0.0
    %732 = vmatpush.msra.mxu0 0.0
    %733 = vmatpush.msra.mxu0 %v80
    %734 = vmatpush.msra.mxu0 %v79
    %735 = vmatpush.msra.mxu0 %v78
    %736 = vmatpush.msra.mxu0 %v77
    %737 = vmatmul.f32.gmra.mxu0 %v719
    %v738 = vpop.f32.mrf.mxu0
    %v739 = vadd.f32 0.0, %v738
    %740 = vdwg.mxu0
    %742 = vrot.lane.b32.xlu0 %v718, 32
    %v743 = vpop.permute.xlu0 %742
    %v744 = vsel %vm105, %v743, 0
    %746 = vmatpush.msra.mxu0 0.0
    %747 = vmatpush.msra.mxu0 0.0
    %748 = vmatpush.msra.mxu0 0.0
    %749 = vmatpush.msra.mxu0 0.0
    %750 = vmatpush.msra.mxu0 0.0
    %751 = vmatpush.msra.mxu0 0.0
    %752 = vmatpush.msra.mxu0 0.0
    %753 = vmatpush.msra.mxu0 0.0
    %754 = vmatpush.msra.mxu0 0.0
    %755 = vmatpush.msra.mxu0 0.0
    %756 = vmatpush.msra.mxu0 0.0
    %757 = vmatpush.msra.mxu0 0.0
    %758 = vmatpush.msra.mxu0 %v76
    %759 = vmatpush.msra.mxu0 %v75
    %760 = vmatpush.msra.mxu0 %v74
    %761 = vmatpush.msra.mxu0 %v73
    %762 = vmatmul.f32.gmra.mxu0 %v744
    %v763 = vpop.f32.mrf.mxu0
    %v764 = vadd.f32 %v739, %v763
    %765 = vdwg.mxu0
    %v766 = vadd.f32 %v764, %v280
    %v767 = vmul.f32 %v766, 0.5
    %v768 = vsel %vm91, %v766, %v767
    %v769 = vtanh.pop %v768
    %v770 = vadd.f32 %v769, 1.0
    %v771 = vmul.f32 %v770, 0.5
    %v772 = vsel %vm91, %v769, %v771
    %v773 = vmul.f32 %v772, %v662
    %775 = vrot.lane.b32.xlu0 %v772, 64
    %v776 = vpop.permute.xlu0 %775
    %v778 = vmul.f32 %v772, %v776
    %780 = vrot.lane.b32.xlu0 %v778, 32
    %v781 = vpop.permute.xlu0 %780
    %v783 = vadd.f32 %v773, %v781
    %v784 = vtanh.pop %v783
    %786 = vrot.lane.b32.xlu0 %v784, 64
    %v787 = vpop.permute.xlu0 %786
    %v789 = vmul.f32 %v772, %v787
    %791 = vrot.lane.b32.xlu0 %v789, 32
    %v792 = vpop.permute.xlu0 %791
    %794 = vst.msk [vmem:[#allocation3 + $0x20] sm:$0xff] %vm105, %v792
    %v795 = vld [vmem:[#allocation2 + $0x28] sm:$0xff]
    %796 = vmatpush.msra.mxu0 0.0
    %797 = vmatpush.msra.mxu0 0.0
    %798 = vmatpush.msra.mxu0 0.0
    %799 = vmatpush.msra.mxu0 0.0
    %800 = vmatpush.msra.mxu0 0.0
    %801 = vmatpush.msra.mxu0 0.0
    %802 = vmatpush.msra.mxu0 0.0
    %803 = vmatpush.msra.mxu0 0.0
    %804 = vmatpush.msra.mxu0 0.0
    %805 = vmatpush.msra.mxu0 0.0
    %806 = vmatpush.msra.mxu0 0.0
    %807 = vmatpush.msra.mxu0 0.0
    %808 = vmatpush.msra.mxu0 %v72
    %809 = vmatpush.msra.mxu0 %v71
    %810 = vmatpush.msra.mxu0 %v70
    %811 = vmatpush.msra.mxu0 %v69
    %812 = vmatmul.f32.gmra.mxu0 %v744
    %v813 = vpop.f32.mrf.mxu0
    %v814 = vadd.f32 0.0, %v813
    %815 = vdwg.mxu0
    %v816 = vadd.f32 %v795, %v814
    %v817 = vmul.f32 %v816, 0.5
    %v818 = vsel %vm91, %v816, %v817
    %v819 = vtanh.pop %v818
    %v820 = vadd.f32 %v819, 1.0
    %v821 = vmul.f32 %v820, 0.5
    %v822 = vsel %vm91, %v819, %v821
    %v823 = vmul.f32 %v822, %v712
    %825 = vrot.lane.b32.xlu0 %v822, 64
    %v826 = vpop.permute.xlu0 %825
    %v828 = vmul.f32 %v822, %v826
    %830 = vrot.lane.b32.xlu0 %v828, 32
    %v831 = vpop.permute.xlu0 %830
    %v833 = vadd.f32 %v823, %v831
    %v834 = vtanh.pop %v833
    %836 = vrot.lane.b32.xlu0 %v834, 64
    %v837 = vpop.permute.xlu0 %836
    %v839 = vmul.f32 %v822, %v837
    %v840 = vsel %vm105, %v792, 0
    %842 = vmatpush.msra.mxu0 0.0
    %843 = vmatpush.msra.mxu0 0.0
    %844 = vmatpush.msra.mxu0 0.0
    %845 = vmatpush.msra.mxu0 0.0
    %846 = vmatpush.msra.mxu0 0.0
    %847 = vmatpush.msra.mxu0 0.0
    %848 = vmatpush.msra.mxu0 0.0
    %849 = vmatpush.msra.mxu0 0.0
    %850 = vmatpush.msra.mxu0 0.0
    %851 = vmatpush.msra.mxu0 0.0
    %852 = vmatpush.msra.mxu0 0.0
    %853 = vmatpush.msra.mxu0 0.0
    %854 = vmatpush.msra.mxu0 %v80
    %855 = vmatpush.msra.mxu0 %v79
    %856 = vmatpush.msra.mxu0 %v78
    %857 = vmatpush.msra.mxu0 %v77
    %858 = vmatmul.f32.gmra.mxu0 %v840
    %v859 = vpop.f32.mrf.mxu0
    %v860 = vadd.f32 0.0, %v859
    %861 = vdwg.mxu0
    %863 = vrot.lane.b32.xlu0 %v839, 32
    %v864 = vpop.permute.xlu0 %863
    %v865 = vsel %vm105, %v864, 0
    %867 = vmatpush.msra.mxu0 0.0
    %868 = vmatpush.msra.mxu0 0.0
    %869 = vmatpush.msra.mxu0 0.0
    %870 = vmatpush.msra.mxu0 0.0
    %871 = vmatpush.msra.mxu0 0.0
    %872 = vmatpush.msra.mxu0 0.0
    %873 = vmatpush.msra.mxu0 0.0
    %874 = vmatpush.msra.mxu0 0.0
    %875 = vmatpush.msra.mxu0 0.0
    %876 = vmatpush.msra.mxu0 0.0
    %877 = vmatpush.msra.mxu0 0.0
    %878 = vmatpush.msra.mxu0 0.0
    %879 = vmatpush.msra.mxu0 %v76
    %880 = vmatpush.msra.mxu0 %v75
    %881 = vmatpush.msra.mxu0 %v74
    %882 = vmatpush.msra.mxu0 %v73
    %883 = vmatmul.f32.gmra.mxu0 %v865
    %v884 = vpop.f32.mrf.mxu0
    %v885 = vadd.f32 %v860, %v884
    %886 = vdwg.mxu0
    %v887 = vadd.f32 %v885, %v280
    %v888 = vmul.f32 %v887, 0.5
    %v889 = vsel %vm91, %v887, %v888
    %v890 = vtanh.pop %v889
    %v891 = vadd.f32 %v890, 1.0
    %v892 = vmul.f32 %v891, 0.5
    %v893 = vsel %vm91, %v890, %v892
    %v894 = vmul.f32 %v893, %v783
    %896 = vrot.lane.b32.xlu0 %v893, 64
    %v897 = vpop.permute.xlu0 %896
    %v899 = vmul.f32 %v893, %v897
    %901 = vrot.lane.b32.xlu0 %v899, 32
    %v902 = vpop.permute.xlu0 %901
    %v904 = vadd.f32 %v894, %v902
    %v905 = vtanh.pop %v904
    %907 = vrot.lane.b32.xlu0 %v905, 64
    %v908 = vpop.permute.xlu0 %907
    %v910 = vmul.f32 %v893, %v908
    %912 = vrot.lane.b32.xlu0 %v910, 32
    %v913 = vpop.permute.xlu0 %912
    %915 = vst.msk [vmem:[#allocation3 + $0x28] sm:$0xff] %vm105, %v913
    %v916 = vld [vmem:[#allocation2 + $0x30] sm:$0xff]
    %917 = vmatpush.msra.mxu0 0.0
    %918 = vmatpush.msra.mxu0 0.0
    %919 = vmatpush.msra.mxu0 0.0
    %920 = vmatpush.msra.mxu0 0.0
    %921 = vmatpush.msra.mxu0 0.0
    %922 = vmatpush.msra.mxu0 0.0
    %923 = vmatpush.msra.mxu0 0.0
    %924 = vmatpush.msra.mxu0 0.0
    %925 = vmatpush.msra.mxu0 0.0
    %926 = vmatpush.msra.mxu0 0.0
    %927 = vmatpush.msra.mxu0 0.0
    %928 = vmatpush.msra.mxu0 0.0
    %929 = vmatpush.msra.mxu0 %v72
    %930 = vmatpush.msra.mxu0 %v71
    %931 = vmatpush.msra.mxu0 %v70
    %932 = vmatpush.msra.mxu0 %v69
    %933 = vmatmul.f32.gmra.mxu0 %v865
    %v934 = vpop.f32.mrf.mxu0
    %v935 = vadd.f32 0.0, %v934
    %936 = vdwg.mxu0
    %v937 = vadd.f32 %v916, %v935
    %v938 = vmul.f32 %v937, 0.5
    %v939 = vsel %vm91, %v937, %v938
    %v940 = vtanh.pop %v939
    %v941 = vadd.f32 %v940, 1.0
    %v942 = vmul.f32 %v941, 0.5
    %v943 = vsel %vm91, %v940, %v942
    %v944 = vmul.f32 %v943, %v833
    %946 = vrot.lane.b32.xlu0 %v943, 64
    %v947 = vpop.permute.xlu0 %946
    %v949 = vmul.f32 %v943, %v947
    %951 = vrot.lane.b32.xlu0 %v949, 32
    %v952 = vpop.permute.xlu0 %951
    %v954 = vadd.f32 %v944, %v952
    %v955 = vtanh.pop %v954
    %957 = vrot.lane.b32.xlu0 %v955, 64
    %v958 = vpop.permute.xlu0 %957
    %v960 = vmul.f32 %v943, %v958
    %v961 = vsel %vm105, %v913, 0
    %963 = vmatpush.msra.mxu0 0.0
    %964 = vmatpush.msra.mxu0 0.0
    %965 = vmatpush.msra.mxu0 0.0
    %966 = vmatpush.msra.mxu0 0.0
    %967 = vmatpush.msra.mxu0 0.0
    %968 = vmatpush.msra.mxu0 0.0
    %969 = vmatpush.msra.mxu0 0.0
    %970 = vmatpush.msra.mxu0 0.0
    %971 = vmatpush.msra.mxu0 0.0
    %972 = vmatpush.msra.mxu0 0.0
    %973 = vmatpush.msra.mxu0 0.0
    %974 = vmatpush.msra.mxu0 0.0
    %975 = vmatpush.msra.mxu0 %v80
    %976 = vmatpush.msra.mxu0 %v79
    %977 = vmatpush.msra.mxu0 %v78
    %978 = vmatpush.msra.mxu0 %v77
    %979 = vmatmul.f32.gmra.mxu0 %v961
    %v980 = vpop.f32.mrf.mxu0
    %v981 = vadd.f32 0.0, %v980
    %982 = vdwg.mxu0
    %984 = vrot.lane.b32.xlu0 %v960, 32
    %v985 = vpop.permute.xlu0 %984
    %v986 = vsel %vm105, %v985, 0
    %988 = vmatpush.msra.mxu0 0.0
    %989 = vmatpush.msra.mxu0 0.0
    %990 = vmatpush.msra.mxu0 0.0
    %991 = vmatpush.msra.mxu0 0.0
    %992 = vmatpush.msra.mxu0 0.0
    %993 = vmatpush.msra.mxu0 0.0
    %994 = vmatpush.msra.mxu0 0.0
    %995 = vmatpush.msra.mxu0 0.0
    %996 = vmatpush.msra.mxu0 0.0
    %997 = vmatpush.msra.mxu0 0.0
    %998 = vmatpush.msra.mxu0 0.0
    %999 = vmatpush.msra.mxu0 0.0
    %1000 = vmatpush.msra.mxu0 %v76
    %1001 = vmatpush.msra.mxu0 %v75
    %1002 = vmatpush.msra.mxu0 %v74
    %1003 = vmatpush.msra.mxu0 %v73
    %1004 = vmatmul.f32.gmra.mxu0 %v986
    %v1005 = vpop.f32.mrf.mxu0
    %v1006 = vadd.f32 %v981, %v1005
    %1007 = vdwg.mxu0
    %v1008 = vadd.f32 %v1006, %v280
    %v1009 = vmul.f32 %v1008, 0.5
    %v1010 = vsel %vm91, %v1008, %v1009
    %v1011 = vtanh.pop %v1010
    %v1012 = vadd.f32 %v1011, 1.0
    %v1013 = vmul.f32 %v1012, 0.5
    %v1014 = vsel %vm91, %v1011, %v1013
    %v1015 = vmul.f32 %v1014, %v904
    %1017 = vrot.lane.b32.xlu0 %v1014, 64
    %v1018 = vpop.permute.xlu0 %1017
    %v1020 = vmul.f32 %v1014, %v1018
    %1022 = vrot.lane.b32.xlu0 %v1020, 32
    %v1023 = vpop.permute.xlu0 %1022
    %v1025 = vadd.f32 %v1015, %v1023
    %v1026 = vtanh.pop %v1025
    %1028 = vrot.lane.b32.xlu0 %v1026, 64
    %v1029 = vpop.permute.xlu0 %1028
    %v1031 = vmul.f32 %v1014, %v1029
    %1033 = vrot.lane.b32.xlu0 %v1031, 32
    %v1034 = vpop.permute.xlu0 %1033
    %1036 = vst.msk [vmem:[#allocation3 + $0x30] sm:$0xff] %vm105, %v1034
    %v1037 = vld [vmem:[#allocation2 + $0x38] sm:$0xff]
    %1038 = vmatpush.msra.mxu0 0.0
    %1039 = vmatpush.msra.mxu0 0.0
    %1040 = vmatpush.msra.mxu0 0.0
    %1041 = vmatpush.msra.mxu0 0.0
    %1042 = vmatpush.msra.mxu0 0.0
    %1043 = vmatpush.msra.mxu0 0.0
    %1044 = vmatpush.msra.mxu0 0.0
    %1045 = vmatpush.msra.mxu0 0.0
    %1046 = vmatpush.msra.mxu0 0.0
    %1047 = vmatpush.msra.mxu0 0.0
    %1048 = vmatpush.msra.mxu0 0.0
    %1049 = vmatpush.msra.mxu0 0.0
    %1050 = vmatpush.msra.mxu0 %v72
    %1051 = vmatpush.msra.mxu0 %v71
    %1052 = vmatpush.msra.mxu0 %v70
    %1053 = vmatpush.msra.mxu0 %v69
    %1054 = vmatmul.f32.gmra.mxu0 %v986
    %v1055 = vpop.f32.mrf.mxu0
    %v1056 = vadd.f32 0.0, %v1055
    %1057 = vdwg.mxu0
    %v1058 = vadd.f32 %v1037, %v1056
    %v1059 = vmul.f32 %v1058, 0.5
    %v1060 = vsel %vm91, %v1058, %v1059
    %v1061 = vtanh.pop %v1060
    %v1062 = vadd.f32 %v1061, 1.0
    %v1063 = vmul.f32 %v1062, 0.5
    %v1064 = vsel %vm91, %v1061, %v1063
    %v1065 = vmul.f32 %v1064, %v954
    %1067 = vrot.lane.b32.xlu0 %v1064, 64
    %v1068 = vpop.permute.xlu0 %1067
    %v1070 = vmul.f32 %v1064, %v1068
    %1072 = vrot.lane.b32.xlu0 %v1070, 32
    %v1073 = vpop.permute.xlu0 %1072
    %v1075 = vadd.f32 %v1065, %v1073
    %v1076 = vtanh.pop %v1075
    %1078 = vrot.lane.b32.xlu0 %v1076, 64
    %v1079 = vpop.permute.xlu0 %1078
    %v1081 = vmul.f32 %v1064, %v1079
    %v1082 = vsel %vm105, %v1034, 0
    %1084 = vmatpush.msra.mxu0 0.0
    %1085 = vmatpush.msra.mxu0 0.0
    %1086 = vmatpush.msra.mxu0 0.0
    %1087 = vmatpush.msra.mxu0 0.0
    %1088 = vmatpush.msra.mxu0 0.0
    %1089 = vmatpush.msra.mxu0 0.0
    %1090 = vmatpush.msra.mxu0 0.0
    %1091 = vmatpush.msra.mxu0 0.0
    %1092 = vmatpush.msra.mxu0 0.0
    %1093 = vmatpush.msra.mxu0 0.0
    %1094 = vmatpush.msra.mxu0 0.0
    %1095 = vmatpush.msra.mxu0 0.0
    %1096 = vmatpush.msra.mxu0 %v80
    %1097 = vmatpush.msra.mxu0 %v79
    %1098 = vmatpush.msra.mxu0 %v78
    %1099 = vmatpush.msra.mxu0 %v77
    %1100 = vmatmul.f32.gmra.mxu0 %v1082
    %v1101 = vpop.f32.mrf.mxu0
    %v1102 = vadd.f32 0.0, %v1101
    %1103 = vdwg.mxu0
    %1105 = vrot.lane.b32.xlu0 %v1081, 32
    %v1106 = vpop.permute.xlu0 %1105
    %v1107 = vsel %vm105, %v1106, 0
    %1109 = vmatpush.msra.mxu0 0.0
    %1110 = vmatpush.msra.mxu0 0.0
    %1111 = vmatpush.msra.mxu0 0.0
    %1112 = vmatpush.msra.mxu0 0.0
    %1113 = vmatpush.msra.mxu0 0.0
    %1114 = vmatpush.msra.mxu0 0.0
    %1115 = vmatpush.msra.mxu0 0.0
    %1116 = vmatpush.msra.mxu0 0.0
    %1117 = vmatpush.msra.mxu0 0.0
    %1118 = vmatpush.msra.mxu0 0.0
    %1119 = vmatpush.msra.mxu0 0.0
    %1120 = vmatpush.msra.mxu0 0.0
    %1121 = vmatpush.msra.mxu0 %v76
    %1122 = vmatpush.msra.mxu0 %v75
    %1123 = vmatpush.msra.mxu0 %v74
    %1124 = vmatpush.msra.mxu0 %v73
    %1125 = vmatmul.f32.gmra.mxu0 %v1107
    %v1126 = vpop.f32.mrf.mxu0
    %v1127 = vadd.f32 %v1102, %v1126
    %1128 = vdwg.mxu0
    %v1129 = vadd.f32 %v1127, %v280
    %v1130 = vmul.f32 %v1129, 0.5
    %v1131 = vsel %vm91, %v1129, %v1130
    %v1132 = vtanh.pop %v1131
    %v1133 = vadd.f32 %v1132, 1.0
    %v1134 = vmul.f32 %v1133, 0.5
    %v1135 = vsel %vm91, %v1132, %v1134
    %v1136 = vmul.f32 %v1135, %v1025
    %1138 = vrot.lane.b32.xlu0 %v1135, 64
    %v1139 = vpop.permute.xlu0 %1138
    %v1141 = vmul.f32 %v1135, %v1139
    %1143 = vrot.lane.b32.xlu0 %v1141, 32
    %v1144 = vpop.permute.xlu0 %1143
    %v1146 = vadd.f32 %v1136, %v1144
    %v1147 = vtanh.pop %v1146
    %1149 = vrot.lane.b32.xlu0 %v1147, 64
    %v1150 = vpop.permute.xlu0 %1149
    %v1152 = vmul.f32 %v1135, %v1150
    %1154 = vrot.lane.b32.xlu0 %v1152, 32
    %v1155 = vpop.permute.xlu0 %1154
    %1157 = vst.msk [vmem:[#allocation3 + $0x38] sm:$0xff] %vm105, %v1155
    %v1158 = vld [vmem:[#allocation2 + $0x40] sm:$0xff]
    %1159 = vmatpush.msra.mxu0 0.0
    %1160 = vmatpush.msra.mxu0 0.0
    %1161 = vmatpush.msra.mxu0 0.0
    %1162 = vmatpush.msra.mxu0 0.0
    %1163 = vmatpush.msra.mxu0 0.0
    %1164 = vmatpush.msra.mxu0 0.0
    %1165 = vmatpush.msra.mxu0 0.0
    %1166 = vmatpush.msra.mxu0 0.0
    %1167 = vmatpush.msra.mxu0 0.0
    %1168 = vmatpush.msra.mxu0 0.0
    %1169 = vmatpush.msra.mxu0 0.0
    %1170 = vmatpush.msra.mxu0 0.0
    %1171 = vmatpush.msra.mxu0 %v72
    %1172 = vmatpush.msra.mxu0 %v71
    %1173 = vmatpush.msra.mxu0 %v70
    %1174 = vmatpush.msra.mxu0 %v69
    %1175 = vmatmul.f32.gmra.mxu0 %v1107
    %v1176 = vpop.f32.mrf.mxu0
    %v1177 = vadd.f32 0.0, %v1176
    %1178 = vdwg.mxu0
    %v1179 = vadd.f32 %v1158, %v1177
    %v1180 = vmul.f32 %v1179, 0.5
    %v1181 = vsel %vm91, %v1179, %v1180
    %v1182 = vtanh.pop %v1181
    %v1183 = vadd.f32 %v1182, 1.0
    %v1184 = vmul.f32 %v1183, 0.5
    %v1185 = vsel %vm91, %v1182, %v1184
    %v1186 = vmul.f32 %v1185, %v1075
    %1188 = vrot.lane.b32.xlu0 %v1185, 64
    %v1189 = vpop.permute.xlu0 %1188
    %v1191 = vmul.f32 %v1185, %v1189
    %1193 = vrot.lane.b32.xlu0 %v1191, 32
    %v1194 = vpop.permute.xlu0 %1193
    %v1196 = vadd.f32 %v1186, %v1194
    %v1197 = vtanh.pop %v1196
    %1199 = vrot.lane.b32.xlu0 %v1197, 64
    %v1200 = vpop.permute.xlu0 %1199
    %v1202 = vmul.f32 %v1185, %v1200
    %v1203 = vsel %vm105, %v1155, 0
    %1205 = vmatpush.msra.mxu0 0.0
    %1206 = vmatpush.msra.mxu0 0.0
    %1207 = vmatpush.msra.mxu0 0.0
    %1208 = vmatpush.msra.mxu0 0.0
    %1209 = vmatpush.msra.mxu0 0.0
    %1210 = vmatpush.msra.mxu0 0.0
    %1211 = vmatpush.msra.mxu0 0.0
    %1212 = vmatpush.msra.mxu0 0.0
    %1213 = vmatpush.msra.mxu0 0.0
    %1214 = vmatpush.msra.mxu0 0.0
    %1215 = vmatpush.msra.mxu0 0.0
    %1216 = vmatpush.msra.mxu0 0.0
    %1217 = vmatpush.msra.mxu0 %v80
    %1218 = vmatpush.msra.mxu0 %v79
    %1219 = vmatpush.msra.mxu0 %v78
    %1220 = vmatpush.msra.mxu0 %v77
    %1221 = vmatmul.f32.gmra.mxu0 %v1203
    %v1222 = vpop.f32.mrf.mxu0
    %v1223 = vadd.f32 0.0, %v1222
    %1224 = vdwg.mxu0
    %1226 = vrot.lane.b32.xlu0 %v1202, 32
    %v1227 = vpop.permute.xlu0 %1226
    %v1228 = vsel %vm105, %v1227, 0
    %1230 = vmatpush.msra.mxu0 0.0
    %1231 = vmatpush.msra.mxu0 0.0
    %1232 = vmatpush.msra.mxu0 0.0
    %1233 = vmatpush.msra.mxu0 0.0
    %1234 = vmatpush.msra.mxu0 0.0
    %1235 = vmatpush.msra.mxu0 0.0
    %1236 = vmatpush.msra.mxu0 0.0
    %1237 = vmatpush.msra.mxu0 0.0
    %1238 = vmatpush.msra.mxu0 0.0
    %1239 = vmatpush.msra.mxu0 0.0
    %1240 = vmatpush.msra.mxu0 0.0
    %1241 = vmatpush.msra.mxu0 0.0
    %1242 = vmatpush.msra.mxu0 %v76
    %1243 = vmatpush.msra.mxu0 %v75
    %1244 = vmatpush.msra.mxu0 %v74
    %1245 = vmatpush.msra.mxu0 %v73
    %1246 = vmatmul.f32.gmra.mxu0 %v1228
    %v1247 = vpop.f32.mrf.mxu0
    %v1248 = vadd.f32 %v1223, %v1247
    %1249 = vdwg.mxu0
    %v1250 = vadd.f32 %v1248, %v280
    %v1251 = vmul.f32 %v1250, 0.5
    %v1252 = vsel %vm91, %v1250, %v1251
    %v1253 = vtanh.pop %v1252
    %v1254 = vadd.f32 %v1253, 1.0
    %v1255 = vmul.f32 %v1254, 0.5
    %v1256 = vsel %vm91, %v1253, %v1255
    %v1257 = vmul.f32 %v1256, %v1146
    %1259 = vrot.lane.b32.xlu0 %v1256, 64
    %v1260 = vpop.permute.xlu0 %1259
    %v1262 = vmul.f32 %v1256, %v1260
    %1264 = vrot.lane.b32.xlu0 %v1262, 32
    %v1265 = vpop.permute.xlu0 %1264
    %v1267 = vadd.f32 %v1257, %v1265
    %v1268 = vtanh.pop %v1267
    %1270 = vrot.lane.b32.xlu0 %v1268, 64
    %v1271 = vpop.permute.xlu0 %1270
    %v1273 = vmul.f32 %v1256, %v1271
    %1275 = vrot.lane.b32.xlu0 %v1273, 32
    %v1276 = vpop.permute.xlu0 %1275
    %1278 = vst.msk [vmem:[#allocation3 + $0x40] sm:$0xff] %vm105, %v1276
    %v1279 = vld [vmem:[#allocation3] sm:$0xff]
    %v1280 = vld [vmem:[#allocation3 + $0x8] sm:$0xff]
    %v1281 = vld [vmem:[#allocation3 + $0x10] sm:$0xff]
    %v1282 = vld [vmem:[#allocation3 + $0x18] sm:$0xff]
    %v1283 = vld [vmem:[#allocation3 + $0x20] sm:$0xff]
    %v1284 = vld [vmem:[#allocation3 + $0x28] sm:$0xff]
    %v1285 = vld [vmem:[#allocation3 + $0x30] sm:$0xff]
    %v1286 = vld [vmem:[#allocation3 + $0x38] sm:$0xff]
    %v1287 = vld [vmem:[#allocation3 + $0x40] sm:$0xff]
    %v1289 = vperm.slane %v86, 0
    %v1292 = vsel %vm105, %v1279, 0
    %v1295 = vsel %vm105, %v1280, 0
    %v1298 = vsel %vm105, %v1281, 0
    %v1301 = vsel %vm105, %v1282, 0
    %v1304 = vsel %vm105, %v1283, 0
    %v1307 = vsel %vm105, %v1284, 0
    %v1310 = vsel %vm105, %v1285, 0
    %v1313 = vsel %vm105, %v1286, 0
    %v1316 = vsel %vm105, %v1287, 0
    %1318 = vmatpush.msra.mxu0 0.0
    %1319 = vmatpush.msra.mxu0 0.0
    %1320 = vmatpush.msra.mxu0 0.0
    %1321 = vmatpush.msra.mxu0 0.0
    %1322 = vmatpush.msra.mxu0 0.0
    %1323 = vmatpush.msra.mxu0 0.0
    %1324 = vmatpush.msra.mxu0 0.0
    %1325 = vmatpush.msra.mxu0 0.0
    %1326 = vmatpush.msra.mxu0 0.0
    %1327 = vmatpush.msra.mxu0 0.0
    %1328 = vmatpush.msra.mxu0 0.0
    %1329 = vmatpush.msra.mxu0 0.0
    %1330 = vmatpush.msra.mxu0 %v85
    %1331 = vmatpush.msra.mxu0 %v84
    %1332 = vmatpush.msra.mxu0 %v83
    %1333 = vmatpush.msra.mxu0 %v82
    %1334 = vmatmul.f32.gmra.mxu0 %v1292
    %v1335 = vpop.f32.mrf.mxu0
    %v1336 = vadd.f32 %v1289, %v1335
    %1337 = vmatmul.f32.gmra.mxu0 %v1295
    %v1338 = vpop.f32.mrf.mxu0
    %v1339 = vadd.f32 %v1289, %v1338
    %1340 = vmatmul.f32.gmra.mxu0 %v1298
    %v1341 = vpop.f32.mrf.mxu0
    %v1342 = vadd.f32 %v1289, %v1341
    %1343 = vmatmul.f32.gmra.mxu0 %v1301
    %v1344 = vpop.f32.mrf.mxu0
    %v1345 = vadd.f32 %v1289, %v1344
    %1346 = vmatmul.f32.gmra.mxu0 %v1304
    %v1347 = vpop.f32.mrf.mxu0
    %v1348 = vadd.f32 %v1289, %v1347
    %1349 = vmatmul.f32.gmra.mxu0 %v1307
    %v1350 = vpop.f32.mrf.mxu0
    %v1351 = vadd.f32 %v1289, %v1350
    %1352 = vmatmul.f32.gmra.mxu0 %v1310
    %v1353 = vpop.f32.mrf.mxu0
    %v1354 = vadd.f32 %v1289, %v1353
    %1355 = vmatmul.f32.gmra.mxu0 %v1313
    %v1356 = vpop.f32.mrf.mxu0
    %v1357 = vadd.f32 %v1289, %v1356
    %1358 = vmatmul.f32.gmra.mxu0 %v1316
    %v1359 = vpop.f32.mrf.mxu0
    %v1360 = vadd.f32 %v1289, %v1359
    %1361 = vdwg.mxu0
    %1362 = vst [vmem:[#allocation9] sm:$0xff] %v1336
    %1363 = vst [vmem:[#allocation9 + $0x8] sm:$0xff] %v1339
    %1364 = vst [vmem:[#allocation9 + $0x10] sm:$0xff] %v1342
    %1365 = vst [vmem:[#allocation9 + $0x18] sm:$0xff] %v1345
    %1366 = vst [vmem:[#allocation9 + $0x20] sm:$0xff] %v1348
    %1367 = vst [vmem:[#allocation9 + $0x28] sm:$0xff] %v1351
    %1368 = vst [vmem:[#allocation9 + $0x30] sm:$0xff] %v1354
    %1369 = vst [vmem:[#allocation9 + $0x38] sm:$0xff] %v1357
    %1370 = vst [vmem:[#allocation9 + $0x40] sm:$0xff] %v1360
    // Predicated region
    $region46: #{tpu_custom_call.1} parent=1 // pred_check
      _
    $region47: #{tpu_custom_call.1} parent=1 // pred_check_branch
      %1372 = sbr.rel (0) target = $region49
    $region48: #{tpu_custom_call.1} parent=1 // pred_region
      %1374 = vsyncadd [#allocation6], 0
      %s1375 = sshll.u32 [#allocation9], 4
      %s1376 = int_to_ptr.vmem [resolvable:$true] %s1375
      %s1377 = sshll.u32 %s9, 4
      %s1378 = int_to_ptr.hbm [resolvable:$true] %s1377
      %1383 = dma.vmem_to_hbm [thread:$0]  %s1376, 1152, %s1378, [#allocation6], 128, 128, 8
    $region49: #{tpu_custom_call.1} parent=1 // pred_fallthru
      _
    // Predicated region
    $region50: #{tpu_custom_call.1} parent=1 // pred_check
      _
    $region51: #{tpu_custom_call.1} parent=1 // pred_check_branch
      %1385 = sbr.rel (0) target = $region53
    $region52: #{tpu_custom_call.1} parent=1 // pred_region
      %1387 = dma.done [#allocation6], 1152
    $region53: #{tpu_custom_call.1} parent=1 // pred_fallthru
      _
    %1388 = vsyncpa [#allocation5], 1
    %1389 = vsyncpa [#allocation8], 1
    %1390 = vsyncpa [#allocation6], 1

</llo_original>
